<compile_context>
chip_gen: v7x
topology: tpu7x:2x2x1
jax: 0.10.0
libtpu: 0.0.40
codegen_flags: <defaults>
</compile_context>

<pallas_src>
import functools

import numpy as np
import jax
import jax.numpy as jnp
from jax import lax
from jax.experimental import pallas as pl
from jax.experimental.pallas import tpu as pltpu

EPS = 1e-5
LANES = 128
SUBLANES = 8
TARGET_ROWS = 1024          # target matmul M (= BB*TP rows) per grid step


def _cdiv(a, b):
    return (a + b - 1) // b


def _round_up(n, m):
    return _cdiv(n, m) * m


def _pad_vec(v, n):
    return jnp.pad(v, (0, n - v.shape[0]))


def _pad_mat(m, r, c):
    return jnp.pad(m, ((0, r - m.shape[0]), (0, c - m.shape[1])))


# ---------------------------------------------------------------------------
# Fused Pallas kernel
# ---------------------------------------------------------------------------
def fused_stage_kernel(p_ref, w0_ref, b0_ref, g0_ref, be0_ref,
                       wk_ref, cb_ref, g1_ref, be1_ref,
                       w1_ref, b1_ref, w2_ref, b2_ref, g2_ref, be2_ref,
                       wo_ref, bo_ref, o_ref, *, BB, TP, kw, nb, C):
    CP = w0_ref.shape[-1]
    M = BB * TP
    inv_c = 1.0 / C

    def ln(y, g, b):
        # One-pass LayerNorm over the real C lanes.  Relies on the zero-pad
        # invariant: activations and g/b are exactly zero in padded lanes, so
        # sums over all CP lanes equal sums over the real C lanes, and g=b=0
        # keeps padded output lanes at zero.
        mean = jnp.sum(y, axis=-1, keepdims=True) * inv_c
        var = jnp.sum(y * y, axis=-1, keepdims=True) * inv_c - mean * mean
        return (y - mean) * lax.rsqrt(var + EPS) * g + b

    # Time position of every flattened (batch, time) row.  Built by sublane
    # concat (no reshape / integer mod needed); used to zero the causal-halo
    # rows that the per-tap rolls wrap in from the previous batch element.
    t_iota = lax.broadcasted_iota(jnp.int32, (TP, CP), 0)
    tpos = jnp.concatenate([t_iota] * BB, axis=0) if BB > 1 else t_iota

    # --- Conv1dBlock: strided conv as patch matmul + bias + ReLU + LN -------
    y = jnp.dot(p_ref[0], w0_ref[...], preferred_element_type=jnp.float32)
    y = jnp.maximum(y + b0_ref[...], 0.0)          # ReLU (dropout p=0: no-op)
    h = ln(y, g0_ref[...], be0_ref[...])           # (M, CP) f32, VMEM-resident

    # TODO(synk): if nb grows beyond a handful of blocks, convert this Python
    # loop to an "arbitrary" grid axis with block-indexed weight BlockSpecs
    # to bound live ranges and per-step VMEM-resident weights.
    for i in range(nb):
        # --- TDSConv2dBlockCausal ------------------------------------------
        # kw causal taps: sublane rolls (XLU slot) of the block input, with
        # the first s rows of each batch element zeroed (causal halo == 0),
        # merged into a single MXU matmul via lane concat.
        taps = []
        for k in range(kw):
            s = kw - 1 - k
            if s == 0:
                taps.append(h.astype(jnp.bfloat16))
            else:
                r = pltpu.roll(h, shift=s, axis=0)
                r = jnp.where(tpos >= s, r, jnp.zeros_like(r))
                taps.append(r.astype(jnp.bfloat16))
        lhs = jnp.concatenate(taps, axis=-1)       # (M, kw*CP) bf16
        z = jnp.dot(lhs, wk_ref[i], preferred_element_type=jnp.float32)
        z = jnp.maximum(z + cb_ref[i], 0.0) + h    # ReLU + residual (f32)
        h = ln(z, g1_ref[i], be1_ref[i])

        # --- TDSFullyConnectedBlock ----------------------------------------
        u = jnp.dot(h.astype(jnp.bfloat16), w1_ref[i],
                    preferred_element_type=jnp.float32)
        u = jnp.maximum(u + b1_ref[i], 0.0)
        v = jnp.dot(u.astype(jnp.bfloat16), w2_ref[i],
                    preferred_element_type=jnp.float32) + b2_ref[i] + h
        h = ln(v, g2_ref[i], be2_ref[i])

    # --- final Linear; f32 accumulation, bf16 store (dominant HBM stream) ---
    out = jnp.dot(h.astype(jnp.bfloat16), wo_ref[...],
                  preferred_element_type=jnp.float32) + bo_ref[...]
    o_ref[0] = out.astype(o_ref.dtype)


# ---------------------------------------------------------------------------
# Forward wrapper (weight prep + single fused pallas_call)
# ---------------------------------------------------------------------------
def tds_causal_stage_forward(x, params, cfg):
    """x: (B, in_channels, T_in) f32 (PyTorch NCT) -> (B, out_channels, T_out) f32."""
    B, Cin, Tin = x.shape
    K, S = cfg["in_conv_kernel_width"], cfg["in_conv_stride"]
    channels, width = cfg["channels"], cfg["feature_width"]
    C = channels * width
    kw = cfg["kernel_width"]
    nb = len(params["blocks"])
    Cout = cfg["out_channels"]
    T = (Tin - K) // S + 1                         # Conv1d VALID output length

    CP = _round_up(C, LANES)
    KP = _round_up(K * Cin, LANES)
    OP = _round_up(Cout, LANES)
    TP = _round_up(T, SUBLANES)                    # sublane-aligned time

    # Batch-block size: M = BB*TP rows per grid step.  Padded time/batch rows
    # never contaminate real rows (causal taps only read the past, wrapped
    # rows are masked); they are stripped after the kernel.
    BB = max(1, min(B, _cdiv(TARGET_ROWS, TP)))
    Bp = _round_up(B, BB)
    G = Bp // BB
    M = BB * TP

    # --- im2col patches via K strided slices + concat (no gather HLO) -------
    x_tc = jnp.transpose(x, (0, 2, 1))                           # (B, Tin, Cin)
    span = (T - 1) * S + 1
    patches = jnp.concatenate(
        [lax.slice_in_dim(x_tc, k, k + span, stride=S, axis=1) for k in range(K)],
        axis=-1)                                                 # (B, T, K*Cin)
    patches = jnp.pad(patches,
                      ((0, Bp - B), (0, TP - T), (0, KP - K * Cin)))
    patches = patches.astype(jnp.bfloat16).reshape(G, M, KP)

    # --- weights: zero-padded to lane-dense 128 multiples, bf16 for the MXU -
    # CONTRACT: padded rows/cols/lanes of every weight, bias, gamma, beta are
    # exactly zero (the in-kernel LayerNorm depends on it).
    w0 = jnp.transpose(params["conv1d_w"], (2, 1, 0)).reshape(K * Cin, C)
    w0 = _pad_mat(w0, KP, CP).astype(jnp.bfloat16)
    b0 = _pad_vec(params["conv1d_b"], CP)[None, :]
    g0 = _pad_vec(params["ln0_g"], CP)[None, :]
    be0 = _pad_vec(params["ln0_b"], CP)[None, :]

    eye_w = jnp.eye(width, dtype=jnp.float32)
    wk_l, cb_l, g1_l, be1_l = [], [], [], []
    w1_l, b1_l, w2_l, b2_l, g2_l, be2_l = [], [], [], [], [], []
    for blk in params["blocks"]:
        wc = blk["conv_w"][:, :, 0, :]                           # (co, ci, kw)
        # (1,kw) conv over (channels,width) densified to (C,C) matrices; kw
        # slices concatenated along rows -> single (kw*CP, CP) MXU weight.
        wk_l.append(jnp.concatenate(
            [_pad_mat(jnp.kron(wc[:, :, k].T, eye_w), CP, CP) for k in range(kw)],
            axis=0))
        cb_l.append(_pad_vec(jnp.repeat(blk["conv_b"], width), CP)[None, :])
        g1_l.append(_pad_vec(blk["ln1_g"], CP)[None, :])
        be1_l.append(_pad_vec(blk["ln1_b"], CP)[None, :])
        w1_l.append(_pad_mat(blk["fc_w1"], CP, CP))
        b1_l.append(_pad_vec(blk["fc_b1"], CP)[None, :])
        w2_l.append(_pad_mat(blk["fc_w2"], CP, CP))
        b2_l.append(_pad_vec(blk["fc_b2"], CP)[None, :])
        g2_l.append(_pad_vec(blk["ln2_g"], CP)[None, :])
        be2_l.append(_pad_vec(blk["ln2_b"], CP)[None, :])

    wk_s = jnp.stack(wk_l).astype(jnp.bfloat16)                  # (nb, kw*CP, CP)
    cb_s = jnp.stack(cb_l)
    g1_s = jnp.stack(g1_l)
    be1_s = jnp.stack(be1_l)
    w1_s = jnp.stack(w1_l).astype(jnp.bfloat16)                  # (nb, CP, CP)
    b1_s = jnp.stack(b1_l)
    w2_s = jnp.stack(w2_l).astype(jnp.bfloat16)
    b2_s = jnp.stack(b2_l)
    g2_s = jnp.stack(g2_l)
    be2_s = jnp.stack(be2_l)

    wo = _pad_mat(params["out_w"], CP, OP).astype(jnp.bfloat16)
    bo = _pad_vec(params["out_b"], OP)[None, :]

    c2 = lambda b: (0, 0)
    c3 = lambda b: (0, 0, 0)
    in_specs = [
        pl.BlockSpec((1, M, KP), lambda b: (b, 0, 0)),           # patches
        pl.BlockSpec((KP, CP), c2), pl.BlockSpec((1, CP), c2),   # w0, b0
        pl.BlockSpec((1, CP), c2), pl.BlockSpec((1, CP), c2),    # g0, be0
        pl.BlockSpec((nb, kw * CP, CP), c3), pl.BlockSpec((nb, 1, CP), c3),
        pl.BlockSpec((nb, 1, CP), c3), pl.BlockSpec((nb, 1, CP), c3),
        pl.BlockSpec((nb, CP, CP), c3), pl.BlockSpec((nb, 1, CP), c3),
        pl.BlockSpec((nb, CP, CP), c3), pl.BlockSpec((nb, 1, CP), c3),
        pl.BlockSpec((nb, 1, CP), c3), pl.BlockSpec((nb, 1, CP), c3),
        pl.BlockSpec((CP, OP), c2), pl.BlockSpec((1, OP), c2),   # wo, bo
    ]

    operands = (patches, w0, b0, g0, be0, wk_s, cb_s, g1_s, be1_s,
                w1_s, b1_s, w2_s, b2_s, g2_s, be2_s, wo, bo)
    mm_flops = 2 * G * M * (KP * CP + nb * (kw * CP * CP + 2 * CP * CP) + CP * OP)
    bytes_accessed = (sum(int(a.size) * a.dtype.itemsize for a in operands)
                      + G * M * OP * 2)
    cost = pl.CostEstimate(flops=mm_flops,
                           transcendentals=G * M * (1 + 2 * nb),
                           bytes_accessed=bytes_accessed)

    y = pl.pallas_call(
        functools.partial(fused_stage_kernel, BB=BB, TP=TP, kw=kw, nb=nb, C=C),
        out_shape=jax.ShapeDtypeStruct((G, M, OP), jnp.bfloat16),
        grid=(G,),
        in_specs=in_specs,
        out_specs=pl.BlockSpec((1, M, OP), lambda b: (b, 0, 0)),
        compiler_params=pltpu.CompilerParams(
            dimension_semantics=("parallel",),
            # Per-step footprint is a few MiB; 48 MiB is ample and safe on
            # every generation (v7x has 64 MiB physical per TC).
            vmem_limit_bytes=48 * 1024 * 1024),
        cost_estimate=cost,
    )(*operands)

    # strip lane / time / batch padding (cheap: narrow real channel count)
    y = y.reshape(Bp, TP, OP)[:B, :T, :Cout].astype(jnp.float32)
    return jnp.transpose(y, (0, 2, 1))                           # back to NCT


# ---------------------------------------------------------------------------
# Pure-JAX f32 reference (follows the PyTorch forward op-by-op)
# ---------------------------------------------------------------------------
def _layernorm_ref(y, g, b):
    mean = jnp.mean(y, axis=-1, keepdims=True)
    var = jnp.mean((y - mean) ** 2, axis=-1, keepdims=True)
    return (y - mean) * lax.rsqrt(var + EPS) * g + b


def _ln_over_c(x_nct, g, b):
    xt = jnp.transpose(x_nct, (0, 2, 1))
    xt = _layernorm_ref(xt, g, b)
    return jnp.transpose(xt, (0, 2, 1))


def reference_forward(x, params, cfg):
    K, S = cfg["in_conv_kernel_width"], cfg["in_conv_stride"]
    channels, width = cfg["channels"], cfg["feature_width"]
    kw = cfg["kernel_width"]

    y = lax.conv_general_dilated(x, params["conv1d_w"], (S,), "VALID",
                                 dimension_numbers=("NCH", "OIH", "NCH"))
    y = jnp.maximum(y + params["conv1d_b"][None, :, None], 0.0)
    y = _ln_over_c(y, params["ln0_g"], params["ln0_b"])

    for blk in params["blocks"]:
        B, C, T = y.shape
        xr = y.reshape(B, channels, width, T)
        z = lax.conv_general_dilated(xr, blk["conv_w"], (1, 1),
                                     ((0, 0), (kw - 1, kw - 1)),
                                     dimension_numbers=("NCHW", "OIHW", "NCHW"))
        z = z + blk["conv_b"][None, :, None, None]
        z = jnp.maximum(z[..., :T], 0.0)
        z = z.reshape(B, C, T) + y
        y = _ln_over_c(z, blk["ln1_g"], blk["ln1_b"])

        yt = jnp.transpose(y, (0, 2, 1))
        hh = jnp.maximum(yt @ blk["fc_w1"] + blk["fc_b1"], 0.0)
        hh = hh @ blk["fc_w2"] + blk["fc_b2"] + yt
        hh = _layernorm_ref(hh, blk["ln2_g"], blk["ln2_b"])
        y = jnp.transpose(hh, (0, 2, 1))

    yt = jnp.transpose(y, (0, 2, 1)) @ params["out_w"] + params["out_b"]
    return jnp.transpose(yt, (0, 2, 1))


# ---------------------------------------------------------------------------

if __name__ == "__main__":
    cfg = dict(
        in_channels=16,
        in_conv_kernel_width=5,
        in_conv_stride=2,
        num_blocks=2,
        channels=4,
        feature_width=8,
        kernel_width=3,
        out_channels=12,
    )
    C = cfg["channels"] * cfg["feature_width"]

    key = jax.random.PRNGKey(0)
    keys = iter(jax.random.split(key, 64))

    def nrm(shape, scale=0.1):
        return scale * jax.random.normal(next(keys), shape, jnp.float32)

    params = {
        "conv1d_w": nrm((C, cfg["in_channels"], cfg["in_conv_kernel_width"])),
        "conv1d_b": nrm((C,)),
        "ln0_g": 1.0 + nrm((C,), 0.05),
        "ln0_b": nrm((C,), 0.05),
        "blocks": [],
        "out_w": nrm((C, cfg["out_channels"])),
        "out_b": nrm((cfg["out_channels"],)),
    }
    for _ in range(cfg["num_blocks"]):
        params["blocks"].append(dict(
            conv_w=nrm((cfg["channels"], cfg["channels"], 1, cfg["kernel_width"])),
            conv_b=nrm((cfg["channels"],)),
            ln1_g=1.0 + nrm((C,), 0.05), ln1_b=nrm((C,), 0.05),
            fc_w1=nrm((C, C)), fc_b1=nrm((C,)),
            fc_w2=nrm((C, C)), fc_b2=nrm((C,)),
            ln2_g=1.0 + nrm((C,), 0.05), ln2_b=nrm((C,), 0.05),
        ))

    # input: (B, in_channels, T_in) — PyTorch NCT layout
    x = jax.random.normal(next(keys), (2, cfg["in_channels"], 32), jnp.float32)

    fwd = jax.jit(lambda xx, pp: tds_causal_stage_forward(xx, pp, cfg))
    out = jax.block_until_ready(fwd(x, params))

    ref = jax.block_until_ready(reference_forward(x, params, cfg))
    # Tolerance accounts for bf16 MXU operands and the bf16 output store
    # (accumulation / LayerNorm statistics stay f32).
    np.testing.assert_allclose(np.asarray(out), np.asarray(ref),
                               rtol=5e-2, atol=5e-2)

    print("KERNEL_OK")
</pallas_src>

<mosaic_0001>
module attributes {stable_mosaic.version = 11 : i64} {
  func.func @fused_stage_kernel(%arg0: i32, %arg1: memref<1x32x128xbf16, #tpu.memory_space<vmem>>, %arg2: memref<128x128xbf16, #tpu.memory_space<vmem>>, %arg3: memref<1x128xf32, #tpu.memory_space<vmem>>, %arg4: memref<1x128xf32, #tpu.memory_space<vmem>>, %arg5: memref<1x128xf32, #tpu.memory_space<vmem>>, %arg6: memref<2x384x128xbf16, #tpu.memory_space<vmem>>, %arg7: memref<2x1x128xf32, #tpu.memory_space<vmem>>, %arg8: memref<2x1x128xf32, #tpu.memory_space<vmem>>, %arg9: memref<2x1x128xf32, #tpu.memory_space<vmem>>, %arg10: memref<2x128x128xbf16, #tpu.memory_space<vmem>>, %arg11: memref<2x1x128xf32, #tpu.memory_space<vmem>>, %arg12: memref<2x128x128xbf16, #tpu.memory_space<vmem>>, %arg13: memref<2x1x128xf32, #tpu.memory_space<vmem>>, %arg14: memref<2x1x128xf32, #tpu.memory_space<vmem>>, %arg15: memref<2x1x128xf32, #tpu.memory_space<vmem>>, %arg16: memref<128x128xbf16, #tpu.memory_space<vmem>>, %arg17: memref<1x128xf32, #tpu.memory_space<vmem>>, %arg18: memref<1x32x128xbf16, #tpu.memory_space<vmem>>) attributes {dimension_semantics = [#tpu.dimension_semantics<parallel>], iteration_bounds = array<i64: 1>, scalar_prefetch = 0 : i64, scratch_operands = 0 : i64, tpu.core_type = #tpu.core_type<tc>, window_params = [{transform_indices = @transform_0, window_bounds = array<i64: 1, 32, 128>}, {pipeline_mode = #tpu.pipeline_mode<synchronous>, transform_indices = @transform_1, window_bounds = array<i64: 128, 128>}, {pipeline_mode = #tpu.pipeline_mode<synchronous>, transform_indices = @transform_2, window_bounds = array<i64: 1, 128>}, {pipeline_mode = #tpu.pipeline_mode<synchronous>, transform_indices = @transform_3, window_bounds = array<i64: 1, 128>}, {pipeline_mode = #tpu.pipeline_mode<synchronous>, transform_indices = @transform_4, window_bounds = array<i64: 1, 128>}, {pipeline_mode = #tpu.pipeline_mode<synchronous>, transform_indices = @transform_5, window_bounds = array<i64: 2, 384, 128>}, {pipeline_mode = #tpu.pipeline_mode<synchronous>, transform_indices = @transform_6, window_bounds = array<i64: 2, 1, 128>}, {pipeline_mode = #tpu.pipeline_mode<synchronous>, transform_indices = @transform_7, window_bounds = array<i64: 2, 1, 128>}, {pipeline_mode = #tpu.pipeline_mode<synchronous>, transform_indices = @transform_8, window_bounds = array<i64: 2, 1, 128>}, {pipeline_mode = #tpu.pipeline_mode<synchronous>, transform_indices = @transform_9, window_bounds = array<i64: 2, 128, 128>}, {pipeline_mode = #tpu.pipeline_mode<synchronous>, transform_indices = @transform_10, window_bounds = array<i64: 2, 1, 128>}, {pipeline_mode = #tpu.pipeline_mode<synchronous>, transform_indices = @transform_11, window_bounds = array<i64: 2, 128, 128>}, {pipeline_mode = #tpu.pipeline_mode<synchronous>, transform_indices = @transform_12, window_bounds = array<i64: 2, 1, 128>}, {pipeline_mode = #tpu.pipeline_mode<synchronous>, transform_indices = @transform_13, window_bounds = array<i64: 2, 1, 128>}, {pipeline_mode = #tpu.pipeline_mode<synchronous>, transform_indices = @transform_14, window_bounds = array<i64: 2, 1, 128>}, {pipeline_mode = #tpu.pipeline_mode<synchronous>, transform_indices = @transform_15, window_bounds = array<i64: 128, 128>}, {pipeline_mode = #tpu.pipeline_mode<synchronous>, transform_indices = @transform_16, window_bounds = array<i64: 1, 128>}, {transform_indices = @transform_17, window_bounds = array<i64: 1, 32, 128>}]} {
    %0 = tpu.iota {dimensions = array<i32: 0>} : vector<16x128xi32>
    %1 = tpu.concatenate %0, %0 in 0 : vector<16x128xi32>, vector<16x128xi32> -> vector<32x128xi32>
    %c0 = arith.constant 0 : index
    %c0_0 = arith.constant 0 : index
    %c0_1 = arith.constant 0 : index
    %2 = vector.load %arg1[%c0, %c0_0, %c0_1] : memref<1x32x128xbf16, #tpu.memory_space<vmem>>, vector<1x32x128xbf16>
    %3 = vector.shape_cast %2 : vector<1x32x128xbf16> to vector<32x128xbf16>
    %c0_2 = arith.constant 0 : index
    %c0_3 = arith.constant 0 : index
    %4 = vector.load %arg2[%c0_2, %c0_3] : memref<128x128xbf16, #tpu.memory_space<vmem>>, vector<128x128xbf16>
    %cst = arith.constant dense<0.000000e+00> : vector<32x128xf32>
    %5 = tpu.matmul %3, %4, %cst {dimension_numbers = #tpu.dot_dimension_numbers<[1], [0], [0], [1], [0, 0, 1, 1], [], []>} : vector<32x128xbf16>, vector<128x128xbf16>, vector<32x128xf32> -> vector<32x128xf32>
    %c0_4 = arith.constant 0 : index
    %c0_5 = arith.constant 0 : index
    %6 = vector.load %arg3[%c0_4, %c0_5] : memref<1x128xf32, #tpu.memory_space<vmem>>, vector<1x128xf32>
    %7 = vector.broadcast %6 : vector<1x128xf32> to vector<32x128xf32>
    %8 = arith.addf %5, %7 : vector<32x128xf32>
    %cst_6 = arith.constant 0.000000e+00 : f32
    %9 = vector.broadcast %cst_6 : f32 to vector<32x128xf32>
    %10 = arith.maximumf %8, %9 : vector<32x128xf32>
    %c0_7 = arith.constant 0 : index
    %c0_8 = arith.constant 0 : index
    %11 = vector.load %arg4[%c0_7, %c0_8] : memref<1x128xf32, #tpu.memory_space<vmem>>, vector<1x128xf32>
    %c0_9 = arith.constant 0 : index
    %c0_10 = arith.constant 0 : index
    %12 = vector.load %arg5[%c0_9, %c0_10] : memref<1x128xf32, #tpu.memory_space<vmem>>, vector<1x128xf32>
    %cst_11 = arith.constant dense<0.000000e+00> : vector<32xf32>
    %13 = vector.multi_reduction <add>, %10, %cst_11 [1] : vector<32x128xf32> to vector<32xf32>
    %14 = vector.shape_cast %13 : vector<32xf32> to vector<32x1xf32>
    %cst_12 = arith.constant 3.125000e-02 : f32
    %15 = vector.broadcast %cst_12 : f32 to vector<32x1xf32>
    %16 = arith.mulf %14, %15 : vector<32x1xf32>
    %17 = arith.mulf %10, %10 : vector<32x128xf32>
    %cst_13 = arith.constant dense<0.000000e+00> : vector<32xf32>
    %18 = vector.multi_reduction <add>, %17, %cst_13 [1] : vector<32x128xf32> to vector<32xf32>
    %19 = vector.shape_cast %18 : vector<32xf32> to vector<32x1xf32>
    %cst_14 = arith.constant 3.125000e-02 : f32
    %20 = vector.broadcast %cst_14 : f32 to vector<32x1xf32>
    %21 = arith.mulf %19, %20 : vector<32x1xf32>
    %22 = arith.mulf %16, %16 : vector<32x1xf32>
    %23 = arith.subf %21, %22 : vector<32x1xf32>
    %24 = vector.broadcast %16 : vector<32x1xf32> to vector<32x128xf32>
    %25 = arith.subf %10, %24 : vector<32x128xf32>
    %cst_15 = arith.constant 9.99999974E-6 : f32
    %26 = vector.broadcast %cst_15 : f32 to vector<32x1xf32>
    %27 = arith.addf %23, %26 : vector<32x1xf32>
    %28 = math.rsqrt %27 : vector<32x1xf32>
    %29 = vector.broadcast %28 : vector<32x1xf32> to vector<32x128xf32>
    %30 = arith.mulf %25, %29 : vector<32x128xf32>
    %31 = vector.broadcast %11 : vector<1x128xf32> to vector<32x128xf32>
    %32 = arith.mulf %30, %31 : vector<32x128xf32>
    %33 = vector.broadcast %12 : vector<1x128xf32> to vector<32x128xf32>
    %34 = arith.addf %32, %33 : vector<32x128xf32>
    %c2_i32 = arith.constant 2 : i32
    %35 = tpu.dynamic_rotate %34 by %c2_i32 dim 0 : vector<32x128xf32>, i32 -> vector<32x128xf32>
    %c2_i32_16 = arith.constant 2 : i32
    %36 = vector.broadcast %c2_i32_16 : i32 to vector<32x128xi32>
    %37 = arith.cmpi sge, %1, %36 : vector<32x128xi32>
    %cst_17 = arith.constant 0.000000e+00 : f32
    %38 = vector.broadcast %cst_17 : f32 to vector<32x128xf32>
    %39 = arith.select %37, %35, %38 : vector<32x128xi1>, vector<32x128xf32>
    %40 = arith.truncf %39 : vector<32x128xf32> to vector<32x128xbf16>
    %c1_i32 = arith.constant 1 : i32
    %41 = tpu.dynamic_rotate %34 by %c1_i32 dim 0 : vector<32x128xf32>, i32 -> vector<32x128xf32>
    %c1_i32_18 = arith.constant 1 : i32
    %42 = vector.broadcast %c1_i32_18 : i32 to vector<32x128xi32>
    %43 = arith.cmpi sge, %1, %42 : vector<32x128xi32>
    %cst_19 = arith.constant 0.000000e+00 : f32
    %44 = vector.broadcast %cst_19 : f32 to vector<32x128xf32>
    %45 = arith.select %43, %41, %44 : vector<32x128xi1>, vector<32x128xf32>
    %46 = arith.truncf %45 : vector<32x128xf32> to vector<32x128xbf16>
    %47 = arith.truncf %34 : vector<32x128xf32> to vector<32x128xbf16>
    %48 = tpu.concatenate %40, %46, %47 in 1 : vector<32x128xbf16>, vector<32x128xbf16>, vector<32x128xbf16> -> vector<32x384xbf16>
    %c0_20 = arith.constant 0 : index
    %c0_21 = arith.constant 0 : index
    %c0_22 = arith.constant 0 : index
    %49 = vector.load %arg6[%c0_20, %c0_21, %c0_22] : memref<2x384x128xbf16, #tpu.memory_space<vmem>>, vector<1x384x128xbf16>
    %50 = vector.shape_cast %49 : vector<1x384x128xbf16> to vector<384x128xbf16>
    %cst_23 = arith.constant dense<0.000000e+00> : vector<32x128xf32>
    %51 = tpu.matmul %48, %50, %cst_23 {dimension_numbers = #tpu.dot_dimension_numbers<[1], [0], [0], [1], [0, 0, 1, 1], [], []>} : vector<32x384xbf16>, vector<384x128xbf16>, vector<32x128xf32> -> vector<32x128xf32>
    %c0_24 = arith.constant 0 : index
    %c0_25 = arith.constant 0 : index
    %c0_26 = arith.constant 0 : index
    %52 = vector.load %arg7[%c0_24, %c0_25, %c0_26] : memref<2x1x128xf32, #tpu.memory_space<vmem>>, vector<1x1x128xf32>
    %53 = vector.shape_cast %52 : vector<1x1x128xf32> to vector<1x128xf32>
    %54 = vector.broadcast %53 : vector<1x128xf32> to vector<32x128xf32>
    %55 = arith.addf %51, %54 : vector<32x128xf32>
    %cst_27 = arith.constant 0.000000e+00 : f32
    %56 = vector.broadcast %cst_27 : f32 to vector<32x128xf32>
    %57 = arith.maximumf %55, %56 : vector<32x128xf32>
    %58 = arith.addf %57, %34 : vector<32x128xf32>
    %c0_28 = arith.constant 0 : index
    %c0_29 = arith.constant 0 : index
    %c0_30 = arith.constant 0 : index
    %59 = vector.load %arg8[%c0_28, %c0_29, %c0_30] : memref<2x1x128xf32, #tpu.memory_space<vmem>>, vector<1x1x128xf32>
    %60 = vector.shape_cast %59 : vector<1x1x128xf32> to vector<1x128xf32>
    %c0_31 = arith.constant 0 : index
    %c0_32 = arith.constant 0 : index
    %c0_33 = arith.constant 0 : index
    %61 = vector.load %arg9[%c0_31, %c0_32, %c0_33] : memref<2x1x128xf32, #tpu.memory_space<vmem>>, vector<1x1x128xf32>
    %62 = vector.shape_cast %61 : vector<1x1x128xf32> to vector<1x128xf32>
    %cst_34 = arith.constant dense<0.000000e+00> : vector<32xf32>
    %63 = vector.multi_reduction <add>, %58, %cst_34 [1] : vector<32x128xf32> to vector<32xf32>
    %64 = vector.shape_cast %63 : vector<32xf32> to vector<32x1xf32>
    %cst_35 = arith.constant 3.125000e-02 : f32
    %65 = vector.broadcast %cst_35 : f32 to vector<32x1xf32>
    %66 = arith.mulf %64, %65 : vector<32x1xf32>
    %67 = arith.mulf %58, %58 : vector<32x128xf32>
    %cst_36 = arith.constant dense<0.000000e+00> : vector<32xf32>
    %68 = vector.multi_reduction <add>, %67, %cst_36 [1] : vector<32x128xf32> to vector<32xf32>
    %69 = vector.shape_cast %68 : vector<32xf32> to vector<32x1xf32>
    %cst_37 = arith.constant 3.125000e-02 : f32
    %70 = vector.broadcast %cst_37 : f32 to vector<32x1xf32>
    %71 = arith.mulf %69, %70 : vector<32x1xf32>
    %72 = arith.mulf %66, %66 : vector<32x1xf32>
    %73 = arith.subf %71, %72 : vector<32x1xf32>
    %74 = vector.broadcast %66 : vector<32x1xf32> to vector<32x128xf32>
    %75 = arith.subf %58, %74 : vector<32x128xf32>
    %cst_38 = arith.constant 9.99999974E-6 : f32
    %76 = vector.broadcast %cst_38 : f32 to vector<32x1xf32>
    %77 = arith.addf %73, %76 : vector<32x1xf32>
    %78 = math.rsqrt %77 : vector<32x1xf32>
    %79 = vector.broadcast %78 : vector<32x1xf32> to vector<32x128xf32>
    %80 = arith.mulf %75, %79 : vector<32x128xf32>
    %81 = vector.broadcast %60 : vector<1x128xf32> to vector<32x128xf32>
    %82 = arith.mulf %80, %81 : vector<32x128xf32>
    %83 = vector.broadcast %62 : vector<1x128xf32> to vector<32x128xf32>
    %84 = arith.addf %82, %83 : vector<32x128xf32>
    %85 = arith.truncf %84 : vector<32x128xf32> to vector<32x128xbf16>
    %c0_39 = arith.constant 0 : index
    %c0_40 = arith.constant 0 : index
    %c0_41 = arith.constant 0 : index
    %86 = vector.load %arg10[%c0_39, %c0_40, %c0_41] : memref<2x128x128xbf16, #tpu.memory_space<vmem>>, vector<1x128x128xbf16>
    %87 = vector.shape_cast %86 : vector<1x128x128xbf16> to vector<128x128xbf16>
    %cst_42 = arith.constant dense<0.000000e+00> : vector<32x128xf32>
    %88 = tpu.matmul %85, %87, %cst_42 {dimension_numbers = #tpu.dot_dimension_numbers<[1], [0], [0], [1], [0, 0, 1, 1], [], []>} : vector<32x128xbf16>, vector<128x128xbf16>, vector<32x128xf32> -> vector<32x128xf32>
    %c0_43 = arith.constant 0 : index
    %c0_44 = arith.constant 0 : index
    %c0_45 = arith.constant 0 : index
    %89 = vector.load %arg11[%c0_43, %c0_44, %c0_45] : memref<2x1x128xf32, #tpu.memory_space<vmem>>, vector<1x1x128xf32>
    %90 = vector.shape_cast %89 : vector<1x1x128xf32> to vector<1x128xf32>
    %91 = vector.broadcast %90 : vector<1x128xf32> to vector<32x128xf32>
    %92 = arith.addf %88, %91 : vector<32x128xf32>
    %cst_46 = arith.constant 0.000000e+00 : f32
    %93 = vector.broadcast %cst_46 : f32 to vector<32x128xf32>
    %94 = arith.maximumf %92, %93 : vector<32x128xf32>
    %95 = arith.truncf %94 : vector<32x128xf32> to vector<32x128xbf16>
    %c0_47 = arith.constant 0 : index
    %c0_48 = arith.constant 0 : index
    %c0_49 = arith.constant 0 : index
    %96 = vector.load %arg12[%c0_47, %c0_48, %c0_49] : memref<2x128x128xbf16, #tpu.memory_space<vmem>>, vector<1x128x128xbf16>
    %97 = vector.shape_cast %96 : vector<1x128x128xbf16> to vector<128x128xbf16>
    %cst_50 = arith.constant dense<0.000000e+00> : vector<32x128xf32>
    %98 = tpu.matmul %95, %97, %cst_50 {dimension_numbers = #tpu.dot_dimension_numbers<[1], [0], [0], [1], [0, 0, 1, 1], [], []>} : vector<32x128xbf16>, vector<128x128xbf16>, vector<32x128xf32> -> vector<32x128xf32>
    %c0_51 = arith.constant 0 : index
    %c0_52 = arith.constant 0 : index
    %c0_53 = arith.constant 0 : index
    %99 = vector.load %arg13[%c0_51, %c0_52, %c0_53] : memref<2x1x128xf32, #tpu.memory_space<vmem>>, vector<1x1x128xf32>
    %100 = vector.shape_cast %99 : vector<1x1x128xf32> to vector<1x128xf32>
    %101 = vector.broadcast %100 : vector<1x128xf32> to vector<32x128xf32>
    %102 = arith.addf %98, %101 : vector<32x128xf32>
    %103 = arith.addf %102, %84 : vector<32x128xf32>
    %c0_54 = arith.constant 0 : index
    %c0_55 = arith.constant 0 : index
    %c0_56 = arith.constant 0 : index
    %104 = vector.load %arg14[%c0_54, %c0_55, %c0_56] : memref<2x1x128xf32, #tpu.memory_space<vmem>>, vector<1x1x128xf32>
    %105 = vector.shape_cast %104 : vector<1x1x128xf32> to vector<1x128xf32>
    %c0_57 = arith.constant 0 : index
    %c0_58 = arith.constant 0 : index
    %c0_59 = arith.constant 0 : index
    %106 = vector.load %arg15[%c0_57, %c0_58, %c0_59] : memref<2x1x128xf32, #tpu.memory_space<vmem>>, vector<1x1x128xf32>
    %107 = vector.shape_cast %106 : vector<1x1x128xf32> to vector<1x128xf32>
    %cst_60 = arith.constant dense<0.000000e+00> : vector<32xf32>
    %108 = vector.multi_reduction <add>, %103, %cst_60 [1] : vector<32x128xf32> to vector<32xf32>
    %109 = vector.shape_cast %108 : vector<32xf32> to vector<32x1xf32>
    %cst_61 = arith.constant 3.125000e-02 : f32
    %110 = vector.broadcast %cst_61 : f32 to vector<32x1xf32>
    %111 = arith.mulf %109, %110 : vector<32x1xf32>
    %112 = arith.mulf %103, %103 : vector<32x128xf32>
    %cst_62 = arith.constant dense<0.000000e+00> : vector<32xf32>
    %113 = vector.multi_reduction <add>, %112, %cst_62 [1] : vector<32x128xf32> to vector<32xf32>
    %114 = vector.shape_cast %113 : vector<32xf32> to vector<32x1xf32>
    %cst_63 = arith.constant 3.125000e-02 : f32
    %115 = vector.broadcast %cst_63 : f32 to vector<32x1xf32>
    %116 = arith.mulf %114, %115 : vector<32x1xf32>
    %117 = arith.mulf %111, %111 : vector<32x1xf32>
    %118 = arith.subf %116, %117 : vector<32x1xf32>
    %119 = vector.broadcast %111 : vector<32x1xf32> to vector<32x128xf32>
    %120 = arith.subf %103, %119 : vector<32x128xf32>
    %cst_64 = arith.constant 9.99999974E-6 : f32
    %121 = vector.broadcast %cst_64 : f32 to vector<32x1xf32>
    %122 = arith.addf %118, %121 : vector<32x1xf32>
    %123 = math.rsqrt %122 : vector<32x1xf32>
    %124 = vector.broadcast %123 : vector<32x1xf32> to vector<32x128xf32>
    %125 = arith.mulf %120, %124 : vector<32x128xf32>
    %126 = vector.broadcast %105 : vector<1x128xf32> to vector<32x128xf32>
    %127 = arith.mulf %125, %126 : vector<32x128xf32>
    %128 = vector.broadcast %107 : vector<1x128xf32> to vector<32x128xf32>
    %129 = arith.addf %127, %128 : vector<32x128xf32>
    %c2_i32_65 = arith.constant 2 : i32
    %130 = tpu.dynamic_rotate %129 by %c2_i32_65 dim 0 : vector<32x128xf32>, i32 -> vector<32x128xf32>
    %c2_i32_66 = arith.constant 2 : i32
    %131 = vector.broadcast %c2_i32_66 : i32 to vector<32x128xi32>
    %132 = arith.cmpi sge, %1, %131 : vector<32x128xi32>
    %cst_67 = arith.constant 0.000000e+00 : f32
    %133 = vector.broadcast %cst_67 : f32 to vector<32x128xf32>
    %134 = arith.select %132, %130, %133 : vector<32x128xi1>, vector<32x128xf32>
    %135 = arith.truncf %134 : vector<32x128xf32> to vector<32x128xbf16>
    %c1_i32_68 = arith.constant 1 : i32
    %136 = tpu.dynamic_rotate %129 by %c1_i32_68 dim 0 : vector<32x128xf32>, i32 -> vector<32x128xf32>
    %c1_i32_69 = arith.constant 1 : i32
    %137 = vector.broadcast %c1_i32_69 : i32 to vector<32x128xi32>
    %138 = arith.cmpi sge, %1, %137 : vector<32x128xi32>
    %cst_70 = arith.constant 0.000000e+00 : f32
    %139 = vector.broadcast %cst_70 : f32 to vector<32x128xf32>
    %140 = arith.select %138, %136, %139 : vector<32x128xi1>, vector<32x128xf32>
    %141 = arith.truncf %140 : vector<32x128xf32> to vector<32x128xbf16>
    %142 = arith.truncf %129 : vector<32x128xf32> to vector<32x128xbf16>
    %143 = tpu.concatenate %135, %141, %142 in 1 : vector<32x128xbf16>, vector<32x128xbf16>, vector<32x128xbf16> -> vector<32x384xbf16>
    %c1 = arith.constant 1 : index
    %c0_71 = arith.constant 0 : index
    %c0_72 = arith.constant 0 : index
    %144 = vector.load %arg6[%c1, %c0_71, %c0_72] : memref<2x384x128xbf16, #tpu.memory_space<vmem>>, vector<1x384x128xbf16>
    %145 = vector.shape_cast %144 : vector<1x384x128xbf16> to vector<384x128xbf16>
    %cst_73 = arith.constant dense<0.000000e+00> : vector<32x128xf32>
    %146 = tpu.matmul %143, %145, %cst_73 {dimension_numbers = #tpu.dot_dimension_numbers<[1], [0], [0], [1], [0, 0, 1, 1], [], []>} : vector<32x384xbf16>, vector<384x128xbf16>, vector<32x128xf32> -> vector<32x128xf32>
    %c1_74 = arith.constant 1 : index
    %c0_75 = arith.constant 0 : index
    %c0_76 = arith.constant 0 : index
    %147 = vector.load %arg7[%c1_74, %c0_75, %c0_76] : memref<2x1x128xf32, #tpu.memory_space<vmem>>, vector<1x1x128xf32>
    %148 = vector.shape_cast %147 : vector<1x1x128xf32> to vector<1x128xf32>
    %149 = vector.broadcast %148 : vector<1x128xf32> to vector<32x128xf32>
    %150 = arith.addf %146, %149 : vector<32x128xf32>
    %cst_77 = arith.constant 0.000000e+00 : f32
    %151 = vector.broadcast %cst_77 : f32 to vector<32x128xf32>
    %152 = arith.maximumf %150, %151 : vector<32x128xf32>
    %153 = arith.addf %152, %129 : vector<32x128xf32>
    %c1_78 = arith.constant 1 : index
    %c0_79 = arith.constant 0 : index
    %c0_80 = arith.constant 0 : index
    %154 = vector.load %arg8[%c1_78, %c0_79, %c0_80] : memref<2x1x128xf32, #tpu.memory_space<vmem>>, vector<1x1x128xf32>
    %155 = vector.shape_cast %154 : vector<1x1x128xf32> to vector<1x128xf32>
    %c1_81 = arith.constant 1 : index
    %c0_82 = arith.constant 0 : index
    %c0_83 = arith.constant 0 : index
    %156 = vector.load %arg9[%c1_81, %c0_82, %c0_83] : memref<2x1x128xf32, #tpu.memory_space<vmem>>, vector<1x1x128xf32>
    %157 = vector.shape_cast %156 : vector<1x1x128xf32> to vector<1x128xf32>
    %cst_84 = arith.constant dense<0.000000e+00> : vector<32xf32>
    %158 = vector.multi_reduction <add>, %153, %cst_84 [1] : vector<32x128xf32> to vector<32xf32>
    %159 = vector.shape_cast %158 : vector<32xf32> to vector<32x1xf32>
    %cst_85 = arith.constant 3.125000e-02 : f32
    %160 = vector.broadcast %cst_85 : f32 to vector<32x1xf32>
    %161 = arith.mulf %159, %160 : vector<32x1xf32>
    %162 = arith.mulf %153, %153 : vector<32x128xf32>
    %cst_86 = arith.constant dense<0.000000e+00> : vector<32xf32>
    %163 = vector.multi_reduction <add>, %162, %cst_86 [1] : vector<32x128xf32> to vector<32xf32>
    %164 = vector.shape_cast %163 : vector<32xf32> to vector<32x1xf32>
    %cst_87 = arith.constant 3.125000e-02 : f32
    %165 = vector.broadcast %cst_87 : f32 to vector<32x1xf32>
    %166 = arith.mulf %164, %165 : vector<32x1xf32>
    %167 = arith.mulf %161, %161 : vector<32x1xf32>
    %168 = arith.subf %166, %167 : vector<32x1xf32>
    %169 = vector.broadcast %161 : vector<32x1xf32> to vector<32x128xf32>
    %170 = arith.subf %153, %169 : vector<32x128xf32>
    %cst_88 = arith.constant 9.99999974E-6 : f32
    %171 = vector.broadcast %cst_88 : f32 to vector<32x1xf32>
    %172 = arith.addf %168, %171 : vector<32x1xf32>
    %173 = math.rsqrt %172 : vector<32x1xf32>
    %174 = vector.broadcast %173 : vector<32x1xf32> to vector<32x128xf32>
    %175 = arith.mulf %170, %174 : vector<32x128xf32>
    %176 = vector.broadcast %155 : vector<1x128xf32> to vector<32x128xf32>
    %177 = arith.mulf %175, %176 : vector<32x128xf32>
    %178 = vector.broadcast %157 : vector<1x128xf32> to vector<32x128xf32>
    %179 = arith.addf %177, %178 : vector<32x128xf32>
    %180 = arith.truncf %179 : vector<32x128xf32> to vector<32x128xbf16>
    %c1_89 = arith.constant 1 : index
    %c0_90 = arith.constant 0 : index
    %c0_91 = arith.constant 0 : index
    %181 = vector.load %arg10[%c1_89, %c0_90, %c0_91] : memref<2x128x128xbf16, #tpu.memory_space<vmem>>, vector<1x128x128xbf16>
    %182 = vector.shape_cast %181 : vector<1x128x128xbf16> to vector<128x128xbf16>
    %cst_92 = arith.constant dense<0.000000e+00> : vector<32x128xf32>
    %183 = tpu.matmul %180, %182, %cst_92 {dimension_numbers = #tpu.dot_dimension_numbers<[1], [0], [0], [1], [0, 0, 1, 1], [], []>} : vector<32x128xbf16>, vector<128x128xbf16>, vector<32x128xf32> -> vector<32x128xf32>
    %c1_93 = arith.constant 1 : index
    %c0_94 = arith.constant 0 : index
    %c0_95 = arith.constant 0 : index
    %184 = vector.load %arg11[%c1_93, %c0_94, %c0_95] : memref<2x1x128xf32, #tpu.memory_space<vmem>>, vector<1x1x128xf32>
    %185 = vector.shape_cast %184 : vector<1x1x128xf32> to vector<1x128xf32>
    %186 = vector.broadcast %185 : vector<1x128xf32> to vector<32x128xf32>
    %187 = arith.addf %183, %186 : vector<32x128xf32>
    %cst_96 = arith.constant 0.000000e+00 : f32
    %188 = vector.broadcast %cst_96 : f32 to vector<32x128xf32>
    %189 = arith.maximumf %187, %188 : vector<32x128xf32>
    %190 = arith.truncf %189 : vector<32x128xf32> to vector<32x128xbf16>
    %c1_97 = arith.constant 1 : index
    %c0_98 = arith.constant 0 : index
    %c0_99 = arith.constant 0 : index
    %191 = vector.load %arg12[%c1_97, %c0_98, %c0_99] : memref<2x128x128xbf16, #tpu.memory_space<vmem>>, vector<1x128x128xbf16>
    %192 = vector.shape_cast %191 : vector<1x128x128xbf16> to vector<128x128xbf16>
    %cst_100 = arith.constant dense<0.000000e+00> : vector<32x128xf32>
    %193 = tpu.matmul %190, %192, %cst_100 {dimension_numbers = #tpu.dot_dimension_numbers<[1], [0], [0], [1], [0, 0, 1, 1], [], []>} : vector<32x128xbf16>, vector<128x128xbf16>, vector<32x128xf32> -> vector<32x128xf32>
    %c1_101 = arith.constant 1 : index
    %c0_102 = arith.constant 0 : index
    %c0_103 = arith.constant 0 : index
    %194 = vector.load %arg13[%c1_101, %c0_102, %c0_103] : memref<2x1x128xf32, #tpu.memory_space<vmem>>, vector<1x1x128xf32>
    %195 = vector.shape_cast %194 : vector<1x1x128xf32> to vector<1x128xf32>
    %196 = vector.broadcast %195 : vector<1x128xf32> to vector<32x128xf32>
    %197 = arith.addf %193, %196 : vector<32x128xf32>
    %198 = arith.addf %197, %179 : vector<32x128xf32>
    %c1_104 = arith.constant 1 : index
    %c0_105 = arith.constant 0 : index
    %c0_106 = arith.constant 0 : index
    %199 = vector.load %arg14[%c1_104, %c0_105, %c0_106] : memref<2x1x128xf32, #tpu.memory_space<vmem>>, vector<1x1x128xf32>
    %200 = vector.shape_cast %199 : vector<1x1x128xf32> to vector<1x128xf32>
    %c1_107 = arith.constant 1 : index
    %c0_108 = arith.constant 0 : index
    %c0_109 = arith.constant 0 : index
    %201 = vector.load %arg15[%c1_107, %c0_108, %c0_109] : memref<2x1x128xf32, #tpu.memory_space<vmem>>, vector<1x1x128xf32>
    %202 = vector.shape_cast %201 : vector<1x1x128xf32> to vector<1x128xf32>
    %cst_110 = arith.constant dense<0.000000e+00> : vector<32xf32>
    %203 = vector.multi_reduction <add>, %198, %cst_110 [1] : vector<32x128xf32> to vector<32xf32>
    %204 = vector.shape_cast %203 : vector<32xf32> to vector<32x1xf32>
    %cst_111 = arith.constant 3.125000e-02 : f32
    %205 = vector.broadcast %cst_111 : f32 to vector<32x1xf32>
    %206 = arith.mulf %204, %205 : vector<32x1xf32>
    %207 = arith.mulf %198, %198 : vector<32x128xf32>
    %cst_112 = arith.constant dense<0.000000e+00> : vector<32xf32>
    %208 = vector.multi_reduction <add>, %207, %cst_112 [1] : vector<32x128xf32> to vector<32xf32>
    %209 = vector.shape_cast %208 : vector<32xf32> to vector<32x1xf32>
    %cst_113 = arith.constant 3.125000e-02 : f32
    %210 = vector.broadcast %cst_113 : f32 to vector<32x1xf32>
    %211 = arith.mulf %209, %210 : vector<32x1xf32>
    %212 = arith.mulf %206, %206 : vector<32x1xf32>
    %213 = arith.subf %211, %212 : vector<32x1xf32>
    %214 = vector.broadcast %206 : vector<32x1xf32> to vector<32x128xf32>
    %215 = arith.subf %198, %214 : vector<32x128xf32>
    %cst_114 = arith.constant 9.99999974E-6 : f32
    %216 = vector.broadcast %cst_114 : f32 to vector<32x1xf32>
    %217 = arith.addf %213, %216 : vector<32x1xf32>
    %218 = math.rsqrt %217 : vector<32x1xf32>
    %219 = vector.broadcast %218 : vector<32x1xf32> to vector<32x128xf32>
    %220 = arith.mulf %215, %219 : vector<32x128xf32>
    %221 = vector.broadcast %200 : vector<1x128xf32> to vector<32x128xf32>
    %222 = arith.mulf %220, %221 : vector<32x128xf32>
    %223 = vector.broadcast %202 : vector<1x128xf32> to vector<32x128xf32>
    %224 = arith.addf %222, %223 : vector<32x128xf32>
    %225 = arith.truncf %224 : vector<32x128xf32> to vector<32x128xbf16>
    %c0_115 = arith.constant 0 : index
    %c0_116 = arith.constant 0 : index
    %226 = vector.load %arg16[%c0_115, %c0_116] : memref<128x128xbf16, #tpu.memory_space<vmem>>, vector<128x128xbf16>
    %cst_117 = arith.constant dense<0.000000e+00> : vector<32x128xf32>
    %227 = tpu.matmul %225, %226, %cst_117 {dimension_numbers = #tpu.dot_dimension_numbers<[1], [0], [0], [1], [0, 0, 1, 1], [], []>} : vector<32x128xbf16>, vector<128x128xbf16>, vector<32x128xf32> -> vector<32x128xf32>
    %c0_118 = arith.constant 0 : index
    %c0_119 = arith.constant 0 : index
    %228 = vector.load %arg17[%c0_118, %c0_119] : memref<1x128xf32, #tpu.memory_space<vmem>>, vector<1x128xf32>
    %229 = vector.broadcast %228 : vector<1x128xf32> to vector<32x128xf32>
    %230 = arith.addf %227, %229 : vector<32x128xf32>
    %231 = arith.truncf %230 : vector<32x128xf32> to vector<32x128xbf16>
    %c0_120 = arith.constant 0 : index
    %c0_121 = arith.constant 0 : index
    %c0_122 = arith.constant 0 : index
    %232 = vector.load %arg18[%c0_120, %c0_121, %c0_122] : memref<1x32x128xbf16, #tpu.memory_space<vmem>>, vector<1x32x128xbf16>
    %233 = vector.shape_cast %232 : vector<1x32x128xbf16> to vector<32x128xbf16>
    %234 = vector.shape_cast %231 : vector<32x128xbf16> to vector<1x32x128xbf16>
    tpu.vector_store %arg18[%c0_120, %c0_121, %c0_122], %234 {strides = array<i32>} : memref<1x32x128xbf16, #tpu.memory_space<vmem>>, vector<1x32x128xbf16>,
    return
  }
  func.func @transform_0(%arg0: i32) -> (i32, i32, i32) {
    %c0_i32 = arith.constant 0 : i32
    %c0_i32_0 = arith.constant 0 : i32
    %c0_i32_1 = arith.constant 0 : i32
    return %arg0, %c0_i32, %c0_i32_0 : i32, i32, i32
  }
  func.func @transform_1(%arg0: i32) -> (i32, i32) {
    %c0_i32 = arith.constant 0 : i32
    %c0_i32_0 = arith.constant 0 : i32
    %c0_i32_1 = arith.constant 0 : i32
    return %c0_i32, %c0_i32_0 : i32, i32
  }
  func.func @transform_2(%arg0: i32) -> (i32, i32) {
    %c0_i32 = arith.constant 0 : i32
    %c0_i32_0 = arith.constant 0 : i32
    %c0_i32_1 = arith.constant 0 : i32
    return %c0_i32, %c0_i32_0 : i32, i32
  }
  func.func @transform_3(%arg0: i32) -> (i32, i32) {
    %c0_i32 = arith.constant 0 : i32
    %c0_i32_0 = arith.constant 0 : i32
    %c0_i32_1 = arith.constant 0 : i32
    return %c0_i32, %c0_i32_0 : i32, i32
  }
  func.func @transform_4(%arg0: i32) -> (i32, i32) {
    %c0_i32 = arith.constant 0 : i32
    %c0_i32_0 = arith.constant 0 : i32
    %c0_i32_1 = arith.constant 0 : i32
    return %c0_i32, %c0_i32_0 : i32, i32
  }
  func.func @transform_5(%arg0: i32) -> (i32, i32, i32) {
    %c0_i32 = arith.constant 0 : i32
    %c0_i32_0 = arith.constant 0 : i32
    %c0_i32_1 = arith.constant 0 : i32
    %c0_i32_2 = arith.constant 0 : i32
    return %c0_i32, %c0_i32_0, %c0_i32_1 : i32, i32, i32
  }
  func.func @transform_6(%arg0: i32) -> (i32, i32, i32) {
    %c0_i32 = arith.constant 0 : i32
    %c0_i32_0 = arith.constant 0 : i32
    %c0_i32_1 = arith.constant 0 : i32
    %c0_i32_2 = arith.constant 0 : i32
    return %c0_i32, %c0_i32_0, %c0_i32_1 : i32, i32, i32
  }
  func.func @transform_7(%arg0: i32) -> (i32, i32, i32) {
    %c0_i32 = arith.constant 0 : i32
    %c0_i32_0 = arith.constant 0 : i32
    %c0_i32_1 = arith.constant 0 : i32
    %c0_i32_2 = arith.constant 0 : i32
    return %c0_i32, %c0_i32_0, %c0_i32_1 : i32, i32, i32
  }
  func.func @transform_8(%arg0: i32) -> (i32, i32, i32) {
    %c0_i32 = arith.constant 0 : i32
    %c0_i32_0 = arith.constant 0 : i32
    %c0_i32_1 = arith.constant 0 : i32
    %c0_i32_2 = arith.constant 0 : i32
    return %c0_i32, %c0_i32_0, %c0_i32_1 : i32, i32, i32
  }
  func.func @transform_9(%arg0: i32) -> (i32, i32, i32) {
    %c0_i32 = arith.constant 0 : i32
    %c0_i32_0 = arith.constant 0 : i32
    %c0_i32_1 = arith.constant 0 : i32
    %c0_i32_2 = arith.constant 0 : i32
    return %c0_i32, %c0_i32_0, %c0_i32_1 : i32, i32, i32
  }
  func.func @transform_10(%arg0: i32) -> (i32, i32, i32) {
    %c0_i32 = arith.constant 0 : i32
    %c0_i32_0 = arith.constant 0 : i32
    %c0_i32_1 = arith.constant 0 : i32
    %c0_i32_2 = arith.constant 0 : i32
    return %c0_i32, %c0_i32_0, %c0_i32_1 : i32, i32, i32
  }
  func.func @transform_11(%arg0: i32) -> (i32, i32, i32) {
    %c0_i32 = arith.constant 0 : i32
    %c0_i32_0 = arith.constant 0 : i32
    %c0_i32_1 = arith.constant 0 : i32
    %c0_i32_2 = arith.constant 0 : i32
    return %c0_i32, %c0_i32_0, %c0_i32_1 : i32, i32, i32
  }
  func.func @transform_12(%arg0: i32) -> (i32, i32, i32) {
    %c0_i32 = arith.constant 0 : i32
    %c0_i32_0 = arith.constant 0 : i32
    %c0_i32_1 = arith.constant 0 : i32
    %c0_i32_2 = arith.constant 0 : i32
    return %c0_i32, %c0_i32_0, %c0_i32_1 : i32, i32, i32
  }
  func.func @transform_13(%arg0: i32) -> (i32, i32, i32) {
    %c0_i32 = arith.constant 0 : i32
    %c0_i32_0 = arith.constant 0 : i32
    %c0_i32_1 = arith.constant 0 : i32
    %c0_i32_2 = arith.constant 0 : i32
    return %c0_i32, %c0_i32_0, %c0_i32_1 : i32, i32, i32
  }
  func.func @transform_14(%arg0: i32) -> (i32, i32, i32) {
    %c0_i32 = arith.constant 0 : i32
    %c0_i32_0 = arith.constant 0 : i32
    %c0_i32_1 = arith.constant 0 : i32
    %c0_i32_2 = arith.constant 0 : i32
    return %c0_i32, %c0_i32_0, %c0_i32_1 : i32, i32, i32
  }
  func.func @transform_15(%arg0: i32) -> (i32, i32) {
    %c0_i32 = arith.constant 0 : i32
    %c0_i32_0 = arith.constant 0 : i32
    %c0_i32_1 = arith.constant 0 : i32
    return %c0_i32, %c0_i32_0 : i32, i32
  }
  func.func @transform_16(%arg0: i32) -> (i32, i32) {
    %c0_i32 = arith.constant 0 : i32
    %c0_i32_0 = arith.constant 0 : i32
    %c0_i32_1 = arith.constant 0 : i32
    return %c0_i32, %c0_i32_0 : i32, i32
  }
  func.func @transform_17(%arg0: i32) -> (i32, i32, i32) {
    %c0_i32 = arith.constant 0 : i32
    %c0_i32_0 = arith.constant 0 : i32
    %c0_i32_1 = arith.constant 0 : i32
    return %arg0, %c0_i32, %c0_i32_0 : i32, i32, i32
  }
}

</mosaic_0001>

<llo_original>
// kernel: _lambda_.1
$region0: #{_lambda_.1}
  #allocation0 [shape = 'u32[]', space=smem, size = 0x4, offset = 0x4, fixed_abs, tag = 'smem constant byte address 0x4 - core index']
  #allocation1 [shape = 'u32[144,128]{1,0:T(1,128)}', space=vmem, size = 0x12000, scoped, tag = 'internal scratch']
  %s0 = inlined_call_operand.vmem [shape: bf16[1,32,128], index: 0, kind: input, shape index: {}]
  %s1 = inlined_call_operand.vmem [shape: bf16[128,128], index: 1, kind: input, shape index: {}]
  %s2 = inlined_call_operand.vmem [shape: f32[1,128], index: 2, kind: input, shape index: {}]
  %s3 = inlined_call_operand.vmem [shape: f32[1,128], index: 3, kind: input, shape index: {}]
  %s4 = inlined_call_operand.vmem [shape: f32[1,128], index: 4, kind: input, shape index: {}]
  %s5 = inlined_call_operand.vmem [shape: bf16[2,384,128], index: 5, kind: input, shape index: {}]
  %s6 = inlined_call_operand.vmem [shape: f32[2,1,128], index: 6, kind: input, shape index: {}]
  %s7 = inlined_call_operand.vmem [shape: f32[2,1,128], index: 7, kind: input, shape index: {}]
  %s8 = inlined_call_operand.vmem [shape: f32[2,1,128], index: 8, kind: input, shape index: {}]
  %s9 = inlined_call_operand.vmem [shape: bf16[2,128,128], index: 9, kind: input, shape index: {}]
  %s10 = inlined_call_operand.vmem [shape: f32[2,1,128], index: 10, kind: input, shape index: {}]
  %s11 = inlined_call_operand.vmem [shape: bf16[2,128,128], index: 11, kind: input, shape index: {}]
  %s12 = inlined_call_operand.vmem [shape: f32[2,1,128], index: 12, kind: input, shape index: {}]
  %s13 = inlined_call_operand.vmem [shape: f32[2,1,128], index: 13, kind: input, shape index: {}]
  %s14 = inlined_call_operand.vmem [shape: f32[2,1,128], index: 14, kind: input, shape index: {}]
  %s15 = inlined_call_operand.vmem [shape: bf16[128,128], index: 15, kind: input, shape index: {}]
  %s16 = inlined_call_operand.vmem [shape: f32[1,128], index: 16, kind: input, shape index: {}]
  %s17 = inlined_call_operand.vmem [shape: bf16[1,32,128], index: 17, kind: output, shape index: {}]
  %s18 = sld [smem:[#allocation0]]
  $region78: #{_lambda_.1} parent=0
    _
  %s20 = ssub.s32 1, %s18
  %s21 = scalar_select 0, %s20, %s18
  // Predicated region
  $region2: #{_lambda_.1} parent=0 // pred_check
    _
  $region3: #{_lambda_.1} parent=0 // pred_check_branch
    %23 = sbr.rel (0) target = $region5
  $region4: #{_lambda_.1} parent=0 // pred_region
    _
  $region5: #{_lambda_.1} parent=0 // pred_fallthru
    _
  // Predicated region
  $region6: #{_lambda_.1} parent=0 // pred_check
    _
  $region7: #{_lambda_.1} parent=0 // pred_check_branch
    %25 = sbr.rel (0) target = $region9
  $region8: #{_lambda_.1} parent=0 // pred_region
    _
  $region9: #{_lambda_.1} parent=0 // pred_fallthru
    _
  // Predicated region
  $region10: #{_lambda_.1} parent=0 // pred_check
    _
  $region11: #{_lambda_.1} parent=0 // pred_check_branch
    %27 = sbr.rel (0) target = $region13
  $region12: #{_lambda_.1} parent=0 // pred_region
    _
  $region13: #{_lambda_.1} parent=0 // pred_fallthru
    _
  // Predicated region
  $region14: #{_lambda_.1} parent=0 // pred_check
    _
  $region15: #{_lambda_.1} parent=0 // pred_check_branch
    %29 = sbr.rel (0) target = $region17
  $region16: #{_lambda_.1} parent=0 // pred_region
    _
  $region17: #{_lambda_.1} parent=0 // pred_fallthru
    _
  // Predicated region
  $region18: #{_lambda_.1} parent=0 // pred_check
    _
  $region19: #{_lambda_.1} parent=0 // pred_check_branch
    %31 = sbr.rel (0) target = $region21
  $region20: #{_lambda_.1} parent=0 // pred_region
    _
  $region21: #{_lambda_.1} parent=0 // pred_fallthru
    _
  // Predicated region
  $region22: #{_lambda_.1} parent=0 // pred_check
    _
  $region23: #{_lambda_.1} parent=0 // pred_check_branch
    %33 = sbr.rel (0) target = $region25
  $region24: #{_lambda_.1} parent=0 // pred_region
    _
  $region25: #{_lambda_.1} parent=0 // pred_fallthru
    _
  // Predicated region
  $region26: #{_lambda_.1} parent=0 // pred_check
    _
  $region27: #{_lambda_.1} parent=0 // pred_check_branch
    %35 = sbr.rel (0) target = $region29
  $region28: #{_lambda_.1} parent=0 // pred_region
    _
  $region29: #{_lambda_.1} parent=0 // pred_fallthru
    _
  // Predicated region
  $region30: #{_lambda_.1} parent=0 // pred_check
    _
  $region31: #{_lambda_.1} parent=0 // pred_check_branch
    %37 = sbr.rel (0) target = $region33
  $region32: #{_lambda_.1} parent=0 // pred_region
    _
  $region33: #{_lambda_.1} parent=0 // pred_fallthru
    _
  // Predicated region
  $region34: #{_lambda_.1} parent=0 // pred_check
    _
  $region35: #{_lambda_.1} parent=0 // pred_check_branch
    %39 = sbr.rel (0) target = $region37
  $region36: #{_lambda_.1} parent=0 // pred_region
    _
  $region37: #{_lambda_.1} parent=0 // pred_fallthru
    _
  // Predicated region
  $region38: #{_lambda_.1} parent=0 // pred_check
    _
  $region39: #{_lambda_.1} parent=0 // pred_check_branch
    %41 = sbr.rel (0) target = $region41
  $region40: #{_lambda_.1} parent=0 // pred_region
    _
  $region41: #{_lambda_.1} parent=0 // pred_fallthru
    _
  // Predicated region
  $region42: #{_lambda_.1} parent=0 // pred_check
    _
  $region43: #{_lambda_.1} parent=0 // pred_check_branch
    %43 = sbr.rel (0) target = $region45
  $region44: #{_lambda_.1} parent=0 // pred_region
    _
  $region45: #{_lambda_.1} parent=0 // pred_fallthru
    _
  // Predicated region
  $region46: #{_lambda_.1} parent=0 // pred_check
    _
  $region47: #{_lambda_.1} parent=0 // pred_check_branch
    %45 = sbr.rel (0) target = $region49
  $region48: #{_lambda_.1} parent=0 // pred_region
    _
  $region49: #{_lambda_.1} parent=0 // pred_fallthru
    _
  // Predicated region
  $region50: #{_lambda_.1} parent=0 // pred_check
    _
  $region51: #{_lambda_.1} parent=0 // pred_check_branch
    %47 = sbr.rel (0) target = $region53
  $region52: #{_lambda_.1} parent=0 // pred_region
    _
  $region53: #{_lambda_.1} parent=0 // pred_fallthru
    _
  // Predicated region
  $region54: #{_lambda_.1} parent=0 // pred_check
    _
  $region55: #{_lambda_.1} parent=0 // pred_check_branch
    %49 = sbr.rel (0) target = $region57
  $region56: #{_lambda_.1} parent=0 // pred_region
    _
  $region57: #{_lambda_.1} parent=0 // pred_fallthru
    _
  // Predicated region
  $region58: #{_lambda_.1} parent=0 // pred_check
    _
  $region59: #{_lambda_.1} parent=0 // pred_check_branch
    %51 = sbr.rel (0) target = $region61
  $region60: #{_lambda_.1} parent=0 // pred_region
    _
  $region61: #{_lambda_.1} parent=0 // pred_fallthru
    _
  // Predicated region
  $region62: #{_lambda_.1} parent=0 // pred_check
    _
  $region63: #{_lambda_.1} parent=0 // pred_check_branch
    %53 = sbr.rel (0) target = $region65
  $region64: #{_lambda_.1} parent=0 // pred_region
    _
  $region65: #{_lambda_.1} parent=0 // pred_fallthru
    _
  // Predicated region
  $region66: #{_lambda_.1} parent=0 // pred_check
    _
  $region67: #{_lambda_.1} parent=0 // pred_check_branch
    %55 = sbr.rel (0) target = $region69
  $region68: #{_lambda_.1} parent=0 // pred_region
    _
  $region69: #{_lambda_.1} parent=0 // pred_fallthru
    _
  %v57 = vlaneseq
  %v58 = vshrl.u32 %v57, 7
  %v59 = vadd.s32 %v58, 8
  %v60 = vld [vmem:[%s0] sm:$0xf]
  %v61 = vld [vmem:[%s0 + $0x4] sm:$0xf]
  %v62 = vld [vmem:[%s0 + $0x8] sm:$0xf]
  %v63 = vld [vmem:[%s0 + $0xc] sm:$0xf]
  %v64 = vld [vmem:[%s1] sm:$0xf]
  %v65 = vld [vmem:[%s1 + $0x4] sm:$0xf]
  %v66 = vld [vmem:[%s1 + $0x8] sm:$0xf]
  %v67 = vld [vmem:[%s1 + $0xc] sm:$0xf]
  %v68 = vld [vmem:[%s1 + $0x10] sm:$0xf]
  %v69 = vld [vmem:[%s1 + $0x14] sm:$0xf]
  %v70 = vld [vmem:[%s1 + $0x18] sm:$0xf]
  %v71 = vld [vmem:[%s1 + $0x1c] sm:$0xf]
  %v72 = vld [vmem:[%s1 + $0x20] sm:$0xf]
  %v73 = vld [vmem:[%s1 + $0x24] sm:$0xf]
  %v74 = vld [vmem:[%s1 + $0x28] sm:$0xf]
  %v75 = vld [vmem:[%s1 + $0x2c] sm:$0xf]
  %v76 = vld [vmem:[%s1 + $0x30] sm:$0xf]
  %v77 = vld [vmem:[%s1 + $0x34] sm:$0xf]
  %v78 = vld [vmem:[%s1 + $0x38] sm:$0xf]
  %v79 = vld [vmem:[%s1 + $0x3c] sm:$0xf]
  %v80 = vld [vmem:[%s2] sm:$0x1]
  %v82 = vlaneseq
  %v83 = vshrl.u32 %v82, 7
  %v84 = vsub.s32 0, %v83
  %v85 = vrot.slane %v80, %v84
  %v91 = vunpack.c.l.b16 %v60
  %v92 = vunpack.c.l.b16 %v61
  %v93 = vunpack.c.l.b16 %v62
  %v94 = vunpack.c.l.b16 %v63
  %v95 = vpack.c.b16 %v92, %v91
  %v96 = vpack.c.b16 %v94, %v93
  %v115 = vunpack.c.l.b16 %v64
  %v116 = vunpack.c.l.b16 %v65
  %v117 = vunpack.c.l.b16 %v66
  %v118 = vunpack.c.l.b16 %v67
  %v119 = vunpack.c.l.b16 %v68
  %v120 = vunpack.c.l.b16 %v69
  %v121 = vunpack.c.l.b16 %v70
  %v122 = vunpack.c.l.b16 %v71
  %v123 = vunpack.c.l.b16 %v72
  %v124 = vunpack.c.l.b16 %v73
  %v125 = vunpack.c.l.b16 %v74
  %v126 = vunpack.c.l.b16 %v75
  %v127 = vunpack.c.l.b16 %v76
  %v128 = vunpack.c.l.b16 %v77
  %v129 = vunpack.c.l.b16 %v78
  %v130 = vunpack.c.l.b16 %v79
  %v131 = vpack.c.b16 %v116, %v115
  %v132 = vpack.c.b16 %v118, %v117
  %v133 = vpack.c.b16 %v120, %v119
  %v134 = vpack.c.b16 %v122, %v121
  %v135 = vpack.c.b16 %v124, %v123
  %v136 = vpack.c.b16 %v126, %v125
  %v137 = vpack.c.b16 %v128, %v127
  %v138 = vpack.c.b16 %v130, %v129
  %147 = vmatprep.subr.bf16.mxu0 0
  %148 = vmatpush1.bf16.msra.mxu0 %v131
  %149 = vmatprep.subr.bf16.mxu0 0
  %150 = vmatpush1.bf16.msra.mxu0 %v132
  %151 = vmatprep.subr.bf16.mxu0 0
  %152 = vmatpush1.bf16.msra.mxu0 %v133
  %153 = vmatprep.subr.bf16.mxu0 0
  %154 = vmatpush1.bf16.msra.mxu0 %v134
  %155 = vmatprep.subr.bf16.mxu0 0
  %156 = vmatpush1.bf16.msra.mxu0 %v135
  %157 = vmatprep.subr.bf16.mxu0 0
  %158 = vmatpush1.bf16.msra.mxu0 %v136
  %159 = vmatprep.subr.bf16.mxu0 0
  %160 = vmatpush1.bf16.msra.mxu0 %v137
  %161 = vmatprep.subr.bf16.mxu0 0
  %162 = vmatpush1.bf16.msra.mxu0 %v138
  %163 = vmatprep.subr.bf16.mxu0 0
  %164 = vmatpush1.bf16.msra.mxu0 0
  %165 = vmatprep.subr.bf16.mxu0 0
  %166 = vmatpush1.bf16.msra.mxu0 0
  %167 = vmatprep.subr.bf16.mxu0 0
  %168 = vmatpush1.bf16.msra.mxu0 0
  %169 = vmatprep.subr.bf16.mxu0 0
  %170 = vmatpush1.bf16.msra.mxu0 0
  %171 = vmatprep.subr.bf16.mxu0 0
  %172 = vmatpush1.bf16.msra.mxu0 0
  %173 = vmatprep.subr.bf16.mxu0 0
  %174 = vmatpush1.bf16.msra.mxu0 0
  %175 = vmatprep.subr.bf16.mxu0 0
  %176 = vmatpush1.bf16.msra.mxu0 0
  %177 = vmatprep.subr.bf16.mxu0 0
  %178 = vmatpush1.bf16.msra.mxu0 0
  %179 = vmatprep.mubr.bf16.mxu0 0
  %180 = vmatmul.mubr.bf16.gmra.mrb[0].mxu0 %v95
  %v181 = vpop.f32.mrb[0].mxu0
  %v182 = vadd.f32 %v85, %v181
  %v183 = vpop.f32.mrb[0].mxu0
  %v184 = vpop.f32.mrb[0].mxu0
  %v185 = vadd.f32 %v85, %v184
  %v186 = vpop.f32.mrb[0].mxu0
  %187 = vmatprep.mubr.bf16.mxu0 0
  %188 = vmatmul.mubr.bf16.gmra.mrb[0].mxu0 %v96
  %v189 = vpop.f32.mrb[0].mxu0
  %v190 = vadd.f32 %v85, %v189
  %v191 = vpop.f32.mrb[0].mxu0
  %v192 = vpop.f32.mrb[0].mxu0
  %v193 = vadd.f32 %v85, %v192
  %v194 = vpop.f32.mrb[0].mxu0
  %195 = vdwg.mxu0
  %v196 = vmax.f32 %v182, 0.0
  %v197 = vmax.f32 %v185, 0.0
  %v198 = vmax.f32 %v190, 0.0
  %v199 = vmax.f32 %v193, 0.0
  %v200 = vld [vmem:[%s3] sm:$0x1]
  %v201 = vld [vmem:[%s4] sm:$0x1]
  %202 = vadd.xlane.f32.xlu0 %v196
  %v203 = vpop.xlane.xlu0 %202
  %204 = vadd.xlane.f32.xlu0 %v197
  %v205 = vpop.xlane.xlu0 %204
  %206 = vadd.xlane.f32.xlu0 %v198
  %v207 = vpop.xlane.xlu0 %206
  %208 = vadd.xlane.f32.xlu0 %v199
  %v209 = vpop.xlane.xlu0 %208
  %v210 = vmul.f32 %v203, 0.03125
  %v211 = vmul.f32 %v205, 0.03125
  %v212 = vmul.f32 %v207, 0.03125
  %v213 = vmul.f32 %v209, 0.03125
  %v214 = vmul.f32 %v196, %v196
  %v215 = vmul.f32 %v197, %v197
  %v216 = vmul.f32 %v198, %v198
  %v217 = vmul.f32 %v199, %v199
  %218 = vadd.xlane.f32.xlu0 %v214
  %v219 = vpop.xlane.xlu0 %218
  %220 = vadd.xlane.f32.xlu0 %v215
  %v221 = vpop.xlane.xlu0 %220
  %222 = vadd.xlane.f32.xlu0 %v216
  %v223 = vpop.xlane.xlu0 %222
  %224 = vadd.xlane.f32.xlu0 %v217
  %v225 = vpop.xlane.xlu0 %224
  %v226 = vmul.f32 %v219, 0.03125
  %v227 = vmul.f32 %v221, 0.03125
  %v228 = vmul.f32 %v223, 0.03125
  %v229 = vmul.f32 %v225, 0.03125
  %v230 = vmul.f32 %v210, %v210
  %v231 = vmul.f32 %v211, %v211
  %v232 = vmul.f32 %v212, %v212
  %v233 = vmul.f32 %v213, %v213
  %v234 = vsub.f32 %v226, %v230
  %v235 = vsub.f32 %v227, %v231
  %v236 = vsub.f32 %v228, %v232
  %v237 = vsub.f32 %v229, %v233
  %v238 = vsub.f32 %v196, %v210
  %v239 = vsub.f32 %v197, %v211
  %v240 = vsub.f32 %v198, %v212
  %v241 = vsub.f32 %v199, %v213
  %v242 = vadd.f32 %v234, 1e-05
  %v243 = vadd.f32 %v235, 1e-05
  %v244 = vadd.f32 %v236, 1e-05
  %v245 = vadd.f32 %v237, 1e-05
  %v246 = vrsqrt.pop %v242
  %v247 = vrsqrt.pop %v243
  %v248 = vrsqrt.pop %v244
  %v249 = vrsqrt.pop %v245
  %v250 = vmul.f32 %v238, %v246
  %v251 = vmul.f32 %v239, %v247
  %v252 = vmul.f32 %v240, %v248
  %v253 = vmul.f32 %v241, %v249
  %v255 = vlaneseq
  %v256 = vshrl.u32 %v255, 7
  %v257 = vsub.s32 0, %v256
  %v258 = vrot.slane %v200, %v257
  %v260 = vmul.f32 %v250, %v258
  %v261 = vmul.f32 %v251, %v258
  %v262 = vmul.f32 %v252, %v258
  %v263 = vmul.f32 %v253, %v258
  %v265 = vlaneseq
  %v266 = vshrl.u32 %v265, 7
  %v267 = vsub.s32 0, %v266
  %v268 = vrot.slane %v201, %v267
  %v270 = vadd.f32 %v260, %v268
  %v271 = vadd.f32 %v261, %v268
  %v272 = vadd.f32 %v262, %v268
  %v273 = vadd.f32 %v263, %v268
  %v274 = vrot.slane %v270, 6
  %v275 = vrot.slane %v271, 6
  %v276 = vrot.slane %v272, 6
  %v277 = vrot.slane %v273, 6
  %vm278 = vcmp.lt.s32.totalorder %v58, 2
  %v279 = vsel %vm278, %v276, %v277
  %v280 = vsel %vm278, %v275, %v276
  %v281 = vsel %vm278, %v274, %v275
  %v282 = vsel %vm278, %v277, %v274
  %vm283 = vcmp.ge.s32.totalorder %v58, 2
  %vm284 = vcmp.ge.s32.totalorder %v59, 2
  %v285 = vsel %vm283, %v282, 0.0
  %v286 = vsel %vm284, %v281, 0.0
  %v287 = vsel %vm283, %v280, 0.0
  %v288 = vsel %vm284, %v279, 0.0
  %v289 = vpack.c.bf16 %v286, %v285
  %v290 = vpack.c.bf16 %v288, %v287
  %v291 = vrot.slane %v270, 7
  %v292 = vrot.slane %v271, 7
  %v293 = vrot.slane %v272, 7
  %v294 = vrot.slane %v273, 7
  %vm295 = vcmp.lt.s32.totalorder %v58, 1
  %v296 = vsel %vm295, %v293, %v294
  %v297 = vsel %vm295, %v292, %v293
  %v298 = vsel %vm295, %v291, %v292
  %v299 = vsel %vm295, %v294, %v291
  %vm300 = vcmp.ge.s32.totalorder %v58, 1
  %vm301 = vcmp.ge.s32.totalorder %v59, 1
  %v302 = vsel %vm300, %v299, 0.0
  %v303 = vsel %vm301, %v298, 0.0
  %v304 = vsel %vm300, %v297, 0.0
  %v305 = vsel %vm301, %v296, 0.0
  %v306 = vpack.c.bf16 %v303, %v302
  %v307 = vpack.c.bf16 %v305, %v304
  %v308 = vpack.c.bf16 %v271, %v270
  %v309 = vpack.c.bf16 %v273, %v272
  %v310 = vld [vmem:[%s5] sm:$0xf]
  %v311 = vld [vmem:[%s5 + $0x4] sm:$0xf]
  %v312 = vld [vmem:[%s5 + $0x8] sm:$0xf]
  %v313 = vld [vmem:[%s5 + $0xc] sm:$0xf]
  %v314 = vld [vmem:[%s5 + $0x10] sm:$0xf]
  %v315 = vld [vmem:[%s5 + $0x14] sm:$0xf]
  %v316 = vld [vmem:[%s5 + $0x18] sm:$0xf]
  %v317 = vld [vmem:[%s5 + $0x1c] sm:$0xf]
  %v318 = vld [vmem:[%s5 + $0x20] sm:$0xf]
  %v319 = vld [vmem:[%s5 + $0x24] sm:$0xf]
  %v320 = vld [vmem:[%s5 + $0x28] sm:$0xf]
  %v321 = vld [vmem:[%s5 + $0x2c] sm:$0xf]
  %v322 = vld [vmem:[%s5 + $0x30] sm:$0xf]
  %v323 = vld [vmem:[%s5 + $0x34] sm:$0xf]
  %v324 = vld [vmem:[%s5 + $0x38] sm:$0xf]
  %v325 = vld [vmem:[%s5 + $0x3c] sm:$0xf]
  %v326 = vld [vmem:[%s5 + $0x40] sm:$0xf]
  %v327 = vld [vmem:[%s5 + $0x44] sm:$0xf]
  %v328 = vld [vmem:[%s5 + $0x48] sm:$0xf]
  %v329 = vld [vmem:[%s5 + $0x4c] sm:$0xf]
  %v330 = vld [vmem:[%s5 + $0x50] sm:$0xf]
  %v331 = vld [vmem:[%s5 + $0x54] sm:$0xf]
  %v332 = vld [vmem:[%s5 + $0x58] sm:$0xf]
  %v333 = vld [vmem:[%s5 + $0x5c] sm:$0xf]
  %v334 = vld [vmem:[%s5 + $0x60] sm:$0xf]
  %v335 = vld [vmem:[%s5 + $0x64] sm:$0xf]
  %v336 = vld [vmem:[%s5 + $0x68] sm:$0xf]
  %v337 = vld [vmem:[%s5 + $0x6c] sm:$0xf]
  %v338 = vld [vmem:[%s5 + $0x70] sm:$0xf]
  %v339 = vld [vmem:[%s5 + $0x74] sm:$0xf]
  %v340 = vld [vmem:[%s5 + $0x78] sm:$0xf]
  %v341 = vld [vmem:[%s5 + $0x7c] sm:$0xf]
  %v342 = vld [vmem:[%s5 + $0x80] sm:$0xf]
  %v343 = vld [vmem:[%s5 + $0x84] sm:$0xf]
  %v344 = vld [vmem:[%s5 + $0x88] sm:$0xf]
  %v345 = vld [vmem:[%s5 + $0x8c] sm:$0xf]
  %v346 = vld [vmem:[%s5 + $0x90] sm:$0xf]
  %v347 = vld [vmem:[%s5 + $0x94] sm:$0xf]
  %v348 = vld [vmem:[%s5 + $0x98] sm:$0xf]
  %v349 = vld [vmem:[%s5 + $0x9c] sm:$0xf]
  %v350 = vld [vmem:[%s5 + $0xa0] sm:$0xf]
  %v351 = vld [vmem:[%s5 + $0xa4] sm:$0xf]
  %v352 = vld [vmem:[%s5 + $0xa8] sm:$0xf]
  %v353 = vld [vmem:[%s5 + $0xac] sm:$0xf]
  %v354 = vld [vmem:[%s5 + $0xb0] sm:$0xf]
  %v355 = vld [vmem:[%s5 + $0xb4] sm:$0xf]
  %v356 = vld [vmem:[%s5 + $0xb8] sm:$0xf]
  %v357 = vld [vmem:[%s5 + $0xbc] sm:$0xf]
  %v358 = vld [vmem:[%s6] sm:$0x1]
  %v360 = vlaneseq
  %v361 = vshrl.u32 %v360, 7
  %v362 = vsub.s32 0, %v361
  %v363 = vrot.slane %v358, %v362
  %v413 = vunpack.c.l.b16 %v310
  %v414 = vunpack.c.l.b16 %v311
  %v415 = vunpack.c.l.b16 %v312
  %v416 = vunpack.c.l.b16 %v313
  %v417 = vunpack.c.l.b16 %v314
  %v418 = vunpack.c.l.b16 %v315
  %v419 = vunpack.c.l.b16 %v316
  %v420 = vunpack.c.l.b16 %v317
  %v421 = vunpack.c.l.b16 %v318
  %v422 = vunpack.c.l.b16 %v319
  %v423 = vunpack.c.l.b16 %v320
  %v424 = vunpack.c.l.b16 %v321
  %v425 = vunpack.c.l.b16 %v322
  %v426 = vunpack.c.l.b16 %v323
  %v427 = vunpack.c.l.b16 %v324
  %v428 = vunpack.c.l.b16 %v325
  %v429 = vunpack.c.l.b16 %v326
  %v430 = vunpack.c.l.b16 %v327
  %v431 = vunpack.c.l.b16 %v328
  %v432 = vunpack.c.l.b16 %v329
  %v433 = vunpack.c.l.b16 %v330
  %v434 = vunpack.c.l.b16 %v331
  %v435 = vunpack.c.l.b16 %v332
  %v436 = vunpack.c.l.b16 %v333
  %v437 = vunpack.c.l.b16 %v334
  %v438 = vunpack.c.l.b16 %v335
  %v439 = vunpack.c.l.b16 %v336
  %v440 = vunpack.c.l.b16 %v337
  %v441 = vunpack.c.l.b16 %v338
  %v442 = vunpack.c.l.b16 %v339
  %v443 = vunpack.c.l.b16 %v340
  %v444 = vunpack.c.l.b16 %v341
  %v445 = vunpack.c.l.b16 %v342
  %v446 = vunpack.c.l.b16 %v343
  %v447 = vunpack.c.l.b16 %v344
  %v448 = vunpack.c.l.b16 %v345
  %v449 = vunpack.c.l.b16 %v346
  %v450 = vunpack.c.l.b16 %v347
  %v451 = vunpack.c.l.b16 %v348
  %v452 = vunpack.c.l.b16 %v349
  %v453 = vunpack.c.l.b16 %v350
  %v454 = vunpack.c.l.b16 %v351
  %v455 = vunpack.c.l.b16 %v352
  %v456 = vunpack.c.l.b16 %v353
  %v457 = vunpack.c.l.b16 %v354
  %v458 = vunpack.c.l.b16 %v355
  %v459 = vunpack.c.l.b16 %v356
  %v460 = vunpack.c.l.b16 %v357
  %v461 = vpack.c.b16 %v414, %v413
  %v462 = vpack.c.b16 %v416, %v415
  %v463 = vpack.c.b16 %v418, %v417
  %v464 = vpack.c.b16 %v420, %v419
  %v465 = vpack.c.b16 %v422, %v421
  %v466 = vpack.c.b16 %v424, %v423
  %v467 = vpack.c.b16 %v426, %v425
  %v468 = vpack.c.b16 %v428, %v427
  %v469 = vpack.c.b16 %v430, %v429
  %v470 = vpack.c.b16 %v432, %v431
  %v471 = vpack.c.b16 %v434, %v433
  %v472 = vpack.c.b16 %v436, %v435
  %v473 = vpack.c.b16 %v438, %v437
  %v474 = vpack.c.b16 %v440, %v439
  %v475 = vpack.c.b16 %v442, %v441
  %v476 = vpack.c.b16 %v444, %v443
  %v477 = vpack.c.b16 %v446, %v445
  %v478 = vpack.c.b16 %v448, %v447
  %v479 = vpack.c.b16 %v450, %v449
  %v480 = vpack.c.b16 %v452, %v451
  %v481 = vpack.c.b16 %v454, %v453
  %v482 = vpack.c.b16 %v456, %v455
  %v483 = vpack.c.b16 %v458, %v457
  %v484 = vpack.c.b16 %v460, %v459
  %509 = vmatprep.subr.bf16.mxu0 0
  %510 = vmatpush1.bf16.msra.mxu0 %v461
  %511 = vmatprep.subr.bf16.mxu0 0
  %512 = vmatpush1.bf16.msra.mxu0 %v462
  %513 = vmatprep.subr.bf16.mxu0 0
  %514 = vmatpush1.bf16.msra.mxu0 %v463
  %515 = vmatprep.subr.bf16.mxu0 0
  %516 = vmatpush1.bf16.msra.mxu0 %v464
  %517 = vmatprep.subr.bf16.mxu0 0
  %518 = vmatpush1.bf16.msra.mxu0 %v465
  %519 = vmatprep.subr.bf16.mxu0 0
  %520 = vmatpush1.bf16.msra.mxu0 %v466
  %521 = vmatprep.subr.bf16.mxu0 0
  %522 = vmatpush1.bf16.msra.mxu0 %v467
  %523 = vmatprep.subr.bf16.mxu0 0
  %524 = vmatpush1.bf16.msra.mxu0 %v468
  %525 = vmatprep.subr.bf16.mxu0 0
  %526 = vmatpush1.bf16.msra.mxu0 %v469
  %527 = vmatprep.subr.bf16.mxu0 0
  %528 = vmatpush1.bf16.msra.mxu0 %v470
  %529 = vmatprep.subr.bf16.mxu0 0
  %530 = vmatpush1.bf16.msra.mxu0 %v471
  %531 = vmatprep.subr.bf16.mxu0 0
  %532 = vmatpush1.bf16.msra.mxu0 %v472
  %533 = vmatprep.subr.bf16.mxu0 0
  %534 = vmatpush1.bf16.msra.mxu0 %v473
  %535 = vmatprep.subr.bf16.mxu0 0
  %536 = vmatpush1.bf16.msra.mxu0 %v474
  %537 = vmatprep.subr.bf16.mxu0 0
  %538 = vmatpush1.bf16.msra.mxu0 %v475
  %539 = vmatprep.subr.bf16.mxu0 0
  %540 = vmatpush1.bf16.msra.mxu0 %v476
  %541 = vmatprep.mubr.bf16.mxu0 %v306
  %542 = vmatmul.mubr.bf16.gmra.mrb[0].mxu0 %v289
  %v543 = vpop.f32.mrb[0].mxu0
  %v544 = vadd.f32 %v363, %v543
  %v545 = vpop.f32.mrb[0].mxu0
  %v546 = vpop.f32.mrb[0].mxu0
  %v547 = vadd.f32 %v363, %v546
  %v548 = vpop.f32.mrb[0].mxu0
  %549 = vmatprep.mubr.bf16.mxu0 %v307
  %550 = vmatmul.mubr.bf16.gmra.mrb[0].mxu0 %v290
  %v551 = vpop.f32.mrb[0].mxu0
  %v552 = vadd.f32 %v363, %v551
  %v553 = vpop.f32.mrb[0].mxu0
  %v554 = vpop.f32.mrb[0].mxu0
  %v555 = vadd.f32 %v363, %v554
  %v556 = vpop.f32.mrb[0].mxu0
  %557 = vdwg.mxu0
  %558 = vmatprep.subr.bf16.mxu0 0
  %559 = vmatpush1.bf16.msra.mxu0 %v477
  %560 = vmatprep.subr.bf16.mxu0 0
  %561 = vmatpush1.bf16.msra.mxu0 %v478
  %562 = vmatprep.subr.bf16.mxu0 0
  %563 = vmatpush1.bf16.msra.mxu0 %v479
  %564 = vmatprep.subr.bf16.mxu0 0
  %565 = vmatpush1.bf16.msra.mxu0 %v480
  %566 = vmatprep.subr.bf16.mxu0 0
  %567 = vmatpush1.bf16.msra.mxu0 %v481
  %568 = vmatprep.subr.bf16.mxu0 0
  %569 = vmatpush1.bf16.msra.mxu0 %v482
  %570 = vmatprep.subr.bf16.mxu0 0
  %571 = vmatpush1.bf16.msra.mxu0 %v483
  %572 = vmatprep.subr.bf16.mxu0 0
  %573 = vmatpush1.bf16.msra.mxu0 %v484
  %574 = vmatprep.subr.bf16.mxu0 0
  %575 = vmatpush1.bf16.msra.mxu0 0
  %576 = vmatprep.subr.bf16.mxu0 0
  %577 = vmatpush1.bf16.msra.mxu0 0
  %578 = vmatprep.subr.bf16.mxu0 0
  %579 = vmatpush1.bf16.msra.mxu0 0
  %580 = vmatprep.subr.bf16.mxu0 0
  %581 = vmatpush1.bf16.msra.mxu0 0
  %582 = vmatprep.subr.bf16.mxu0 0
  %583 = vmatpush1.bf16.msra.mxu0 0
  %584 = vmatprep.subr.bf16.mxu0 0
  %585 = vmatpush1.bf16.msra.mxu0 0
  %586 = vmatprep.subr.bf16.mxu0 0
  %587 = vmatpush1.bf16.msra.mxu0 0
  %588 = vmatprep.subr.bf16.mxu0 0
  %589 = vmatpush1.bf16.msra.mxu0 0
  %590 = vmatprep.mubr.bf16.mxu0 0
  %591 = vmatmul.mubr.bf16.gmra.mrb[0].mxu0 %v308
  %v592 = vpop.f32.mrb[0].mxu0
  %v593 = vadd.f32 %v544, %v592
  %v594 = vpop.f32.mrb[0].mxu0
  %v595 = vpop.f32.mrb[0].mxu0
  %v596 = vadd.f32 %v547, %v595
  %v597 = vpop.f32.mrb[0].mxu0
  %598 = vmatprep.mubr.bf16.mxu0 0
  %599 = vmatmul.mubr.bf16.gmra.mrb[0].mxu0 %v309
  %v600 = vpop.f32.mrb[0].mxu0
  %v601 = vadd.f32 %v552, %v600
  %v602 = vpop.f32.mrb[0].mxu0
  %v603 = vpop.f32.mrb[0].mxu0
  %v604 = vadd.f32 %v555, %v603
  %v605 = vpop.f32.mrb[0].mxu0
  %606 = vdwg.mxu0
  %v607 = vmax.f32 %v593, 0.0
  %v608 = vmax.f32 %v596, 0.0
  %v609 = vmax.f32 %v601, 0.0
  %v610 = vmax.f32 %v604, 0.0
  %v611 = vadd.f32 %v607, %v270
  %v612 = vadd.f32 %v608, %v271
  %v613 = vadd.f32 %v609, %v272
  %v614 = vadd.f32 %v610, %v273
  %v615 = vld [vmem:[%s7] sm:$0x1]
  %v616 = vld [vmem:[%s8] sm:$0x1]
  %617 = vadd.xlane.f32.xlu0 %v611
  %v618 = vpop.xlane.xlu0 %617
  %619 = vadd.xlane.f32.xlu0 %v612
  %v620 = vpop.xlane.xlu0 %619
  %621 = vadd.xlane.f32.xlu0 %v613
  %v622 = vpop.xlane.xlu0 %621
  %623 = vadd.xlane.f32.xlu0 %v614
  %v624 = vpop.xlane.xlu0 %623
  %v625 = vmul.f32 %v618, 0.03125
  %v626 = vmul.f32 %v620, 0.03125
  %v627 = vmul.f32 %v622, 0.03125
  %v628 = vmul.f32 %v624, 0.03125
  %v629 = vmul.f32 %v611, %v611
  %v630 = vmul.f32 %v612, %v612
  %v631 = vmul.f32 %v613, %v613
  %v632 = vmul.f32 %v614, %v614
  %633 = vadd.xlane.f32.xlu0 %v629
  %v634 = vpop.xlane.xlu0 %633
  %635 = vadd.xlane.f32.xlu0 %v630
  %v636 = vpop.xlane.xlu0 %635
  %637 = vadd.xlane.f32.xlu0 %v631
  %v638 = vpop.xlane.xlu0 %637
  %639 = vadd.xlane.f32.xlu0 %v632
  %v640 = vpop.xlane.xlu0 %639
  %v641 = vmul.f32 %v634, 0.03125
  %v642 = vmul.f32 %v636, 0.03125
  %v643 = vmul.f32 %v638, 0.03125
  %v644 = vmul.f32 %v640, 0.03125
  %v645 = vmul.f32 %v625, %v625
  %v646 = vmul.f32 %v626, %v626
  %v647 = vmul.f32 %v627, %v627
  %v648 = vmul.f32 %v628, %v628
  %v649 = vsub.f32 %v641, %v645
  %v650 = vsub.f32 %v642, %v646
  %v651 = vsub.f32 %v643, %v647
  %v652 = vsub.f32 %v644, %v648
  %v653 = vsub.f32 %v611, %v625
  %v654 = vsub.f32 %v612, %v626
  %v655 = vsub.f32 %v613, %v627
  %v656 = vsub.f32 %v614, %v628
  %v657 = vadd.f32 %v649, 1e-05
  %v658 = vadd.f32 %v650, 1e-05
  %v659 = vadd.f32 %v651, 1e-05
  %v660 = vadd.f32 %v652, 1e-05
  %v661 = vrsqrt.pop %v657
  %v662 = vrsqrt.pop %v658
  %v663 = vrsqrt.pop %v659
  %v664 = vrsqrt.pop %v660
  %v665 = vmul.f32 %v653, %v661
  %v666 = vmul.f32 %v654, %v662
  %v667 = vmul.f32 %v655, %v663
  %v668 = vmul.f32 %v656, %v664
  %v670 = vlaneseq
  %v671 = vshrl.u32 %v670, 7
  %v672 = vsub.s32 0, %v671
  %v673 = vrot.slane %v615, %v672
  %v675 = vmul.f32 %v665, %v673
  %v676 = vmul.f32 %v666, %v673
  %v677 = vmul.f32 %v667, %v673
  %v678 = vmul.f32 %v668, %v673
  %v680 = vlaneseq
  %v681 = vshrl.u32 %v680, 7
  %v682 = vsub.s32 0, %v681
  %v683 = vrot.slane %v616, %v682
  %v685 = vadd.f32 %v675, %v683
  %v686 = vadd.f32 %v676, %v683
  %v687 = vadd.f32 %v677, %v683
  %v688 = vadd.f32 %v678, %v683
  %v689 = vpack.c.bf16 %v686, %v685
  %v690 = vpack.c.bf16 %v688, %v687
  %v691 = vld [vmem:[%s9] sm:$0xf]
  %v692 = vld [vmem:[%s9 + $0x4] sm:$0xf]
  %v693 = vld [vmem:[%s9 + $0x8] sm:$0xf]
  %v694 = vld [vmem:[%s9 + $0xc] sm:$0xf]
  %v695 = vld [vmem:[%s9 + $0x10] sm:$0xf]
  %v696 = vld [vmem:[%s9 + $0x14] sm:$0xf]
  %v697 = vld [vmem:[%s9 + $0x18] sm:$0xf]
  %v698 = vld [vmem:[%s9 + $0x1c] sm:$0xf]
  %v699 = vld [vmem:[%s9 + $0x20] sm:$0xf]
  %v700 = vld [vmem:[%s9 + $0x24] sm:$0xf]
  %v701 = vld [vmem:[%s9 + $0x28] sm:$0xf]
  %v702 = vld [vmem:[%s9 + $0x2c] sm:$0xf]
  %v703 = vld [vmem:[%s9 + $0x30] sm:$0xf]
  %v704 = vld [vmem:[%s9 + $0x34] sm:$0xf]
  %v705 = vld [vmem:[%s9 + $0x38] sm:$0xf]
  %v706 = vld [vmem:[%s9 + $0x3c] sm:$0xf]
  %v707 = vld [vmem:[%s10] sm:$0x1]
  %v709 = vlaneseq
  %v710 = vshrl.u32 %v709, 7
  %v711 = vsub.s32 0, %v710
  %v712 = vrot.slane %v707, %v711
  %v730 = vunpack.c.l.b16 %v691
  %v731 = vunpack.c.l.b16 %v692
  %v732 = vunpack.c.l.b16 %v693
  %v733 = vunpack.c.l.b16 %v694
  %v734 = vunpack.c.l.b16 %v695
  %v735 = vunpack.c.l.b16 %v696
  %v736 = vunpack.c.l.b16 %v697
  %v737 = vunpack.c.l.b16 %v698
  %v738 = vunpack.c.l.b16 %v699
  %v739 = vunpack.c.l.b16 %v700
  %v740 = vunpack.c.l.b16 %v701
  %v741 = vunpack.c.l.b16 %v702
  %v742 = vunpack.c.l.b16 %v703
  %v743 = vunpack.c.l.b16 %v704
  %v744 = vunpack.c.l.b16 %v705
  %v745 = vunpack.c.l.b16 %v706
  %v746 = vpack.c.b16 %v731, %v730
  %v747 = vpack.c.b16 %v733, %v732
  %v748 = vpack.c.b16 %v735, %v734
  %v749 = vpack.c.b16 %v737, %v736
  %v750 = vpack.c.b16 %v739, %v738
  %v751 = vpack.c.b16 %v741, %v740
  %v752 = vpack.c.b16 %v743, %v742
  %v753 = vpack.c.b16 %v745, %v744
  %762 = vmatprep.subr.bf16.mxu0 0
  %763 = vmatpush1.bf16.msra.mxu0 %v746
  %764 = vmatprep.subr.bf16.mxu0 0
  %765 = vmatpush1.bf16.msra.mxu0 %v747
  %766 = vmatprep.subr.bf16.mxu0 0
  %767 = vmatpush1.bf16.msra.mxu0 %v748
  %768 = vmatprep.subr.bf16.mxu0 0
  %769 = vmatpush1.bf16.msra.mxu0 %v749
  %770 = vmatprep.subr.bf16.mxu0 0
  %771 = vmatpush1.bf16.msra.mxu0 %v750
  %772 = vmatprep.subr.bf16.mxu0 0
  %773 = vmatpush1.bf16.msra.mxu0 %v751
  %774 = vmatprep.subr.bf16.mxu0 0
  %775 = vmatpush1.bf16.msra.mxu0 %v752
  %776 = vmatprep.subr.bf16.mxu0 0
  %777 = vmatpush1.bf16.msra.mxu0 %v753
  %778 = vmatprep.subr.bf16.mxu0 0
  %779 = vmatpush1.bf16.msra.mxu0 0
  %780 = vmatprep.subr.bf16.mxu0 0
  %781 = vmatpush1.bf16.msra.mxu0 0
  %782 = vmatprep.subr.bf16.mxu0 0
  %783 = vmatpush1.bf16.msra.mxu0 0
  %784 = vmatprep.subr.bf16.mxu0 0
  %785 = vmatpush1.bf16.msra.mxu0 0
  %786 = vmatprep.subr.bf16.mxu0 0
  %787 = vmatpush1.bf16.msra.mxu0 0
  %788 = vmatprep.subr.bf16.mxu0 0
  %789 = vmatpush1.bf16.msra.mxu0 0
  %790 = vmatprep.subr.bf16.mxu0 0
  %791 = vmatpush1.bf16.msra.mxu0 0
  %792 = vmatprep.subr.bf16.mxu0 0
  %793 = vmatpush1.bf16.msra.mxu0 0
  %794 = vmatprep.mubr.bf16.mxu0 0
  %795 = vmatmul.mubr.bf16.gmra.mrb[0].mxu0 %v689
  %v796 = vpop.f32.mrb[0].mxu0
  %v797 = vadd.f32 %v712, %v796
  %v798 = vpop.f32.mrb[0].mxu0
  %v799 = vpop.f32.mrb[0].mxu0
  %v800 = vadd.f32 %v712, %v799
  %v801 = vpop.f32.mrb[0].mxu0
  %802 = vmatprep.mubr.bf16.mxu0 0
  %803 = vmatmul.mubr.bf16.gmra.mrb[0].mxu0 %v690
  %v804 = vpop.f32.mrb[0].mxu0
  %v805 = vadd.f32 %v712, %v804
  %v806 = vpop.f32.mrb[0].mxu0
  %v807 = vpop.f32.mrb[0].mxu0
  %v808 = vadd.f32 %v712, %v807
  %v809 = vpop.f32.mrb[0].mxu0
  %810 = vdwg.mxu0
  %v811 = vmax.f32 %v797, 0.0
  %v812 = vmax.f32 %v800, 0.0
  %v813 = vmax.f32 %v805, 0.0
  %v814 = vmax.f32 %v808, 0.0
  %v815 = vpack.c.bf16 %v812, %v811
  %v816 = vpack.c.bf16 %v814, %v813
  %v817 = vld [vmem:[%s11] sm:$0xf]
  %v818 = vld [vmem:[%s11 + $0x4] sm:$0xf]
  %v819 = vld [vmem:[%s11 + $0x8] sm:$0xf]
  %v820 = vld [vmem:[%s11 + $0xc] sm:$0xf]
  %v821 = vld [vmem:[%s11 + $0x10] sm:$0xf]
  %v822 = vld [vmem:[%s11 + $0x14] sm:$0xf]
  %v823 = vld [vmem:[%s11 + $0x18] sm:$0xf]
  %v824 = vld [vmem:[%s11 + $0x1c] sm:$0xf]
  %v825 = vld [vmem:[%s11 + $0x20] sm:$0xf]
  %v826 = vld [vmem:[%s11 + $0x24] sm:$0xf]
  %v827 = vld [vmem:[%s11 + $0x28] sm:$0xf]
  %v828 = vld [vmem:[%s11 + $0x2c] sm:$0xf]
  %v829 = vld [vmem:[%s11 + $0x30] sm:$0xf]
  %v830 = vld [vmem:[%s11 + $0x34] sm:$0xf]
  %v831 = vld [vmem:[%s11 + $0x38] sm:$0xf]
  %v832 = vld [vmem:[%s11 + $0x3c] sm:$0xf]
  %v833 = vld [vmem:[%s12] sm:$0x1]
  %v835 = vlaneseq
  %v836 = vshrl.u32 %v835, 7
  %v837 = vsub.s32 0, %v836
  %v838 = vrot.slane %v833, %v837
  %v856 = vunpack.c.l.b16 %v817
  %v857 = vunpack.c.l.b16 %v818
  %v858 = vunpack.c.l.b16 %v819
  %v859 = vunpack.c.l.b16 %v820
  %v860 = vunpack.c.l.b16 %v821
  %v861 = vunpack.c.l.b16 %v822
  %v862 = vunpack.c.l.b16 %v823
  %v863 = vunpack.c.l.b16 %v824
  %v864 = vunpack.c.l.b16 %v825
  %v865 = vunpack.c.l.b16 %v826
  %v866 = vunpack.c.l.b16 %v827
  %v867 = vunpack.c.l.b16 %v828
  %v868 = vunpack.c.l.b16 %v829
  %v869 = vunpack.c.l.b16 %v830
  %v870 = vunpack.c.l.b16 %v831
  %v871 = vunpack.c.l.b16 %v832
  %v872 = vpack.c.b16 %v857, %v856
  %v873 = vpack.c.b16 %v859, %v858
  %v874 = vpack.c.b16 %v861, %v860
  %v875 = vpack.c.b16 %v863, %v862
  %v876 = vpack.c.b16 %v865, %v864
  %v877 = vpack.c.b16 %v867, %v866
  %v878 = vpack.c.b16 %v869, %v868
  %v879 = vpack.c.b16 %v871, %v870
  %888 = vmatprep.subr.bf16.mxu0 0
  %889 = vmatpush1.bf16.msra.mxu0 %v872
  %890 = vmatprep.subr.bf16.mxu0 0
  %891 = vmatpush1.bf16.msra.mxu0 %v873
  %892 = vmatprep.subr.bf16.mxu0 0
  %893 = vmatpush1.bf16.msra.mxu0 %v874
  %894 = vmatprep.subr.bf16.mxu0 0
  %895 = vmatpush1.bf16.msra.mxu0 %v875
  %896 = vmatprep.subr.bf16.mxu0 0
  %897 = vmatpush1.bf16.msra.mxu0 %v876
  %898 = vmatprep.subr.bf16.mxu0 0
  %899 = vmatpush1.bf16.msra.mxu0 %v877
  %900 = vmatprep.subr.bf16.mxu0 0
  %901 = vmatpush1.bf16.msra.mxu0 %v878
  %902 = vmatprep.subr.bf16.mxu0 0
  %903 = vmatpush1.bf16.msra.mxu0 %v879
  %904 = vmatprep.subr.bf16.mxu0 0
  %905 = vmatpush1.bf16.msra.mxu0 0
  %906 = vmatprep.subr.bf16.mxu0 0
  %907 = vmatpush1.bf16.msra.mxu0 0
  %908 = vmatprep.subr.bf16.mxu0 0
  %909 = vmatpush1.bf16.msra.mxu0 0
  %910 = vmatprep.subr.bf16.mxu0 0
  %911 = vmatpush1.bf16.msra.mxu0 0
  %912 = vmatprep.subr.bf16.mxu0 0
  %913 = vmatpush1.bf16.msra.mxu0 0
  %914 = vmatprep.subr.bf16.mxu0 0
  %915 = vmatpush1.bf16.msra.mxu0 0
  %916 = vmatprep.subr.bf16.mxu0 0
  %917 = vmatpush1.bf16.msra.mxu0 0
  %918 = vmatprep.subr.bf16.mxu0 0
  %919 = vmatpush1.bf16.msra.mxu0 0
  %920 = vmatprep.mubr.bf16.mxu0 0
  %921 = vmatmul.mubr.bf16.gmra.mrb[0].mxu0 %v815
  %v922 = vpop.f32.mrb[0].mxu0
  %v923 = vadd.f32 %v838, %v922
  %v924 = vpop.f32.mrb[0].mxu0
  %v925 = vpop.f32.mrb[0].mxu0
  %v926 = vadd.f32 %v838, %v925
  %v927 = vpop.f32.mrb[0].mxu0
  %928 = vmatprep.mubr.bf16.mxu0 0
  %929 = vmatmul.mubr.bf16.gmra.mrb[0].mxu0 %v816
  %v930 = vpop.f32.mrb[0].mxu0
  %v931 = vadd.f32 %v838, %v930
  %v932 = vpop.f32.mrb[0].mxu0
  %v933 = vpop.f32.mrb[0].mxu0
  %v934 = vadd.f32 %v838, %v933
  %v935 = vpop.f32.mrb[0].mxu0
  %936 = vdwg.mxu0
  %v937 = vadd.f32 %v923, %v685
  %v938 = vadd.f32 %v926, %v686
  %v939 = vadd.f32 %v931, %v687
  %v940 = vadd.f32 %v934, %v688
  %v941 = vld [vmem:[%s13] sm:$0x1]
  %v942 = vld [vmem:[%s14] sm:$0x1]
  %943 = vadd.xlane.f32.xlu0 %v937
  %v944 = vpop.xlane.xlu0 %943
  %945 = vadd.xlane.f32.xlu0 %v938
  %v946 = vpop.xlane.xlu0 %945
  %947 = vadd.xlane.f32.xlu0 %v939
  %v948 = vpop.xlane.xlu0 %947
  %949 = vadd.xlane.f32.xlu0 %v940
  %v950 = vpop.xlane.xlu0 %949
  %v951 = vmul.f32 %v944, 0.03125
  %v952 = vmul.f32 %v946, 0.03125
  %v953 = vmul.f32 %v948, 0.03125
  %v954 = vmul.f32 %v950, 0.03125
  %v955 = vmul.f32 %v937, %v937
  %v956 = vmul.f32 %v938, %v938
  %v957 = vmul.f32 %v939, %v939
  %v958 = vmul.f32 %v940, %v940
  %959 = vadd.xlane.f32.xlu0 %v955
  %v960 = vpop.xlane.xlu0 %959
  %961 = vadd.xlane.f32.xlu0 %v956
  %v962 = vpop.xlane.xlu0 %961
  %963 = vadd.xlane.f32.xlu0 %v957
  %v964 = vpop.xlane.xlu0 %963
  %965 = vadd.xlane.f32.xlu0 %v958
  %v966 = vpop.xlane.xlu0 %965
  %v967 = vmul.f32 %v960, 0.03125
  %v968 = vmul.f32 %v962, 0.03125
  %v969 = vmul.f32 %v964, 0.03125
  %v970 = vmul.f32 %v966, 0.03125
  %v971 = vmul.f32 %v951, %v951
  %v972 = vmul.f32 %v952, %v952
  %v973 = vmul.f32 %v953, %v953
  %v974 = vmul.f32 %v954, %v954
  %v975 = vsub.f32 %v967, %v971
  %v976 = vsub.f32 %v968, %v972
  %v977 = vsub.f32 %v969, %v973
  %v978 = vsub.f32 %v970, %v974
  %v979 = vsub.f32 %v937, %v951
  %v980 = vsub.f32 %v938, %v952
  %v981 = vsub.f32 %v939, %v953
  %v982 = vsub.f32 %v940, %v954
  %v983 = vadd.f32 %v975, 1e-05
  %v984 = vadd.f32 %v976, 1e-05
  %v985 = vadd.f32 %v977, 1e-05
  %v986 = vadd.f32 %v978, 1e-05
  %v987 = vrsqrt.pop %v983
  %v988 = vrsqrt.pop %v984
  %v989 = vrsqrt.pop %v985
  %v990 = vrsqrt.pop %v986
  %v991 = vmul.f32 %v979, %v987
  %v992 = vmul.f32 %v980, %v988
  %v993 = vmul.f32 %v981, %v989
  %v994 = vmul.f32 %v982, %v990
  %v996 = vlaneseq
  %v997 = vshrl.u32 %v996, 7
  %v998 = vsub.s32 0, %v997
  %v999 = vrot.slane %v941, %v998
  %v1001 = vmul.f32 %v991, %v999
  %v1002 = vmul.f32 %v992, %v999
  %v1003 = vmul.f32 %v993, %v999
  %v1004 = vmul.f32 %v994, %v999
  %v1006 = vlaneseq
  %v1007 = vshrl.u32 %v1006, 7
  %v1008 = vsub.s32 0, %v1007
  %v1009 = vrot.slane %v942, %v1008
  %v1011 = vadd.f32 %v1001, %v1009
  %v1012 = vadd.f32 %v1002, %v1009
  %v1013 = vadd.f32 %v1003, %v1009
  %v1014 = vadd.f32 %v1004, %v1009
  %v1015 = vrot.slane %v1011, 6
  %v1016 = vrot.slane %v1012, 6
  %v1017 = vrot.slane %v1013, 6
  %v1018 = vrot.slane %v1014, 6
  %v1019 = vsel %vm278, %v1017, %v1018
  %v1020 = vsel %vm278, %v1016, %v1017
  %v1021 = vsel %vm278, %v1015, %v1016
  %v1022 = vsel %vm278, %v1018, %v1015
  %v1023 = vsel %vm283, %v1022, 0.0
  %v1024 = vsel %vm284, %v1021, 0.0
  %v1025 = vsel %vm283, %v1020, 0.0
  %v1026 = vsel %vm284, %v1019, 0.0
  %v1027 = vpack.c.bf16 %v1024, %v1023
  %v1028 = vpack.c.bf16 %v1026, %v1025
  %v1029 = vrot.slane %v1011, 7
  %v1030 = vrot.slane %v1012, 7
  %v1031 = vrot.slane %v1013, 7
  %v1032 = vrot.slane %v1014, 7
  %v1033 = vsel %vm295, %v1031, %v1032
  %v1034 = vsel %vm295, %v1030, %v1031
  %v1035 = vsel %vm295, %v1029, %v1030
  %v1036 = vsel %vm295, %v1032, %v1029
  %v1037 = vsel %vm300, %v1036, 0.0
  %v1038 = vsel %vm301, %v1035, 0.0
  %v1039 = vsel %vm300, %v1034, 0.0
  %v1040 = vsel %vm301, %v1033, 0.0
  %v1041 = vpack.c.bf16 %v1038, %v1037
  %v1042 = vpack.c.bf16 %v1040, %v1039
  %v1043 = vpack.c.bf16 %v1012, %v1011
  %v1044 = vpack.c.bf16 %v1014, %v1013
  %s1045 = scalar_lea.vmem %s5, 192
  %v1046 = vld [vmem:[%s1045] sm:$0xf]
  %v1047 = vld [vmem:[%s1045 + $0x4] sm:$0xf]
  %v1048 = vld [vmem:[%s1045 + $0x8] sm:$0xf]
  %v1049 = vld [vmem:[%s1045 + $0xc] sm:$0xf]
  %v1050 = vld [vmem:[%s1045 + $0x10] sm:$0xf]
  %v1051 = vld [vmem:[%s1045 + $0x14] sm:$0xf]
  %v1052 = vld [vmem:[%s1045 + $0x18] sm:$0xf]
  %v1053 = vld [vmem:[%s1045 + $0x1c] sm:$0xf]
  %v1054 = vld [vmem:[%s1045 + $0x20] sm:$0xf]
  %v1055 = vld [vmem:[%s1045 + $0x24] sm:$0xf]
  %v1056 = vld [vmem:[%s1045 + $0x28] sm:$0xf]
  %v1057 = vld [vmem:[%s1045 + $0x2c] sm:$0xf]
  %v1058 = vld [vmem:[%s1045 + $0x30] sm:$0xf]
  %v1059 = vld [vmem:[%s1045 + $0x34] sm:$0xf]
  %v1060 = vld [vmem:[%s1045 + $0x38] sm:$0xf]
  %v1061 = vld [vmem:[%s1045 + $0x3c] sm:$0xf]
  %v1062 = vld [vmem:[%s1045 + $0x40] sm:$0xf]
  %v1063 = vld [vmem:[%s1045 + $0x44] sm:$0xf]
  %v1064 = vld [vmem:[%s1045 + $0x48] sm:$0xf]
  %v1065 = vld [vmem:[%s1045 + $0x4c] sm:$0xf]
  %v1066 = vld [vmem:[%s1045 + $0x50] sm:$0xf]
  %v1067 = vld [vmem:[%s1045 + $0x54] sm:$0xf]
  %v1068 = vld [vmem:[%s1045 + $0x58] sm:$0xf]
  %v1069 = vld [vmem:[%s1045 + $0x5c] sm:$0xf]
  %v1070 = vld [vmem:[%s1045 + $0x60] sm:$0xf]
  %v1071 = vld [vmem:[%s1045 + $0x64] sm:$0xf]
  %v1072 = vld [vmem:[%s1045 + $0x68] sm:$0xf]
  %v1073 = vld [vmem:[%s1045 + $0x6c] sm:$0xf]
  %v1074 = vld [vmem:[%s1045 + $0x70] sm:$0xf]
  %v1075 = vld [vmem:[%s1045 + $0x74] sm:$0xf]
  %v1076 = vld [vmem:[%s1045 + $0x78] sm:$0xf]
  %v1077 = vld [vmem:[%s1045 + $0x7c] sm:$0xf]
  %v1078 = vld [vmem:[%s1045 + $0x80] sm:$0xf]
  %v1079 = vld [vmem:[%s1045 + $0x84] sm:$0xf]
  %v1080 = vld [vmem:[%s1045 + $0x88] sm:$0xf]
  %v1081 = vld [vmem:[%s1045 + $0x8c] sm:$0xf]
  %v1082 = vld [vmem:[%s1045 + $0x90] sm:$0xf]
  %v1083 = vld [vmem:[%s1045 + $0x94] sm:$0xf]
  %v1084 = vld [vmem:[%s1045 + $0x98] sm:$0xf]
  %v1085 = vld [vmem:[%s1045 + $0x9c] sm:$0xf]
  %v1086 = vld [vmem:[%s1045 + $0xa0] sm:$0xf]
  %v1087 = vld [vmem:[%s1045 + $0xa4] sm:$0xf]
  %v1088 = vld [vmem:[%s1045 + $0xa8] sm:$0xf]
  %v1089 = vld [vmem:[%s1045 + $0xac] sm:$0xf]
  %v1090 = vld [vmem:[%s1045 + $0xb0] sm:$0xf]
  %v1091 = vld [vmem:[%s1045 + $0xb4] sm:$0xf]
  %v1092 = vld [vmem:[%s1045 + $0xb8] sm:$0xf]
  %v1093 = vld [vmem:[%s1045 + $0xbc] sm:$0xf]
  %s1094 = scalar_lea.vmem %s6, 1
  %v1095 = vld [vmem:[%s1094] sm:$0x1]
  %v1097 = vlaneseq
  %v1098 = vshrl.u32 %v1097, 7
  %v1099 = vsub.s32 0, %v1098
  %v1100 = vrot.slane %v1095, %v1099
  %v1150 = vunpack.c.l.b16 %v1046
  %v1151 = vunpack.c.l.b16 %v1047
  %v1152 = vunpack.c.l.b16 %v1048
  %v1153 = vunpack.c.l.b16 %v1049
  %v1154 = vunpack.c.l.b16 %v1050
  %v1155 = vunpack.c.l.b16 %v1051
  %v1156 = vunpack.c.l.b16 %v1052
  %v1157 = vunpack.c.l.b16 %v1053
  %v1158 = vunpack.c.l.b16 %v1054
  %v1159 = vunpack.c.l.b16 %v1055
  %v1160 = vunpack.c.l.b16 %v1056
  %v1161 = vunpack.c.l.b16 %v1057
  %v1162 = vunpack.c.l.b16 %v1058
  %v1163 = vunpack.c.l.b16 %v1059
  %v1164 = vunpack.c.l.b16 %v1060
  %v1165 = vunpack.c.l.b16 %v1061
  %v1166 = vunpack.c.l.b16 %v1062
  %v1167 = vunpack.c.l.b16 %v1063
  %v1168 = vunpack.c.l.b16 %v1064
  %v1169 = vunpack.c.l.b16 %v1065
  %v1170 = vunpack.c.l.b16 %v1066
  %v1171 = vunpack.c.l.b16 %v1067
  %v1172 = vunpack.c.l.b16 %v1068
  %v1173 = vunpack.c.l.b16 %v1069
  %v1174 = vunpack.c.l.b16 %v1070
  %v1175 = vunpack.c.l.b16 %v1071
  %v1176 = vunpack.c.l.b16 %v1072
  %v1177 = vunpack.c.l.b16 %v1073
  %v1178 = vunpack.c.l.b16 %v1074
  %v1179 = vunpack.c.l.b16 %v1075
  %v1180 = vunpack.c.l.b16 %v1076
  %v1181 = vunpack.c.l.b16 %v1077
  %v1182 = vunpack.c.l.b16 %v1078
  %v1183 = vunpack.c.l.b16 %v1079
  %v1184 = vunpack.c.l.b16 %v1080
  %v1185 = vunpack.c.l.b16 %v1081
  %v1186 = vunpack.c.l.b16 %v1082
  %v1187 = vunpack.c.l.b16 %v1083
  %v1188 = vunpack.c.l.b16 %v1084
  %v1189 = vunpack.c.l.b16 %v1085
  %v1190 = vunpack.c.l.b16 %v1086
  %v1191 = vunpack.c.l.b16 %v1087
  %v1192 = vunpack.c.l.b16 %v1088
  %v1193 = vunpack.c.l.b16 %v1089
  %v1194 = vunpack.c.l.b16 %v1090
  %v1195 = vunpack.c.l.b16 %v1091
  %v1196 = vunpack.c.l.b16 %v1092
  %v1197 = vunpack.c.l.b16 %v1093
  %v1198 = vpack.c.b16 %v1151, %v1150
  %v1199 = vpack.c.b16 %v1153, %v1152
  %v1200 = vpack.c.b16 %v1155, %v1154
  %v1201 = vpack.c.b16 %v1157, %v1156
  %v1202 = vpack.c.b16 %v1159, %v1158
  %v1203 = vpack.c.b16 %v1161, %v1160
  %v1204 = vpack.c.b16 %v1163, %v1162
  %v1205 = vpack.c.b16 %v1165, %v1164
  %v1206 = vpack.c.b16 %v1167, %v1166
  %v1207 = vpack.c.b16 %v1169, %v1168
  %v1208 = vpack.c.b16 %v1171, %v1170
  %v1209 = vpack.c.b16 %v1173, %v1172
  %v1210 = vpack.c.b16 %v1175, %v1174
  %v1211 = vpack.c.b16 %v1177, %v1176
  %v1212 = vpack.c.b16 %v1179, %v1178
  %v1213 = vpack.c.b16 %v1181, %v1180
  %v1214 = vpack.c.b16 %v1183, %v1182
  %v1215 = vpack.c.b16 %v1185, %v1184
  %v1216 = vpack.c.b16 %v1187, %v1186
  %v1217 = vpack.c.b16 %v1189, %v1188
  %v1218 = vpack.c.b16 %v1191, %v1190
  %v1219 = vpack.c.b16 %v1193, %v1192
  %v1220 = vpack.c.b16 %v1195, %v1194
  %v1221 = vpack.c.b16 %v1197, %v1196
  %1246 = vmatprep.subr.bf16.mxu0 0
  %1247 = vmatpush1.bf16.msra.mxu0 %v1198
  %1248 = vmatprep.subr.bf16.mxu0 0
  %1249 = vmatpush1.bf16.msra.mxu0 %v1199
  %1250 = vmatprep.subr.bf16.mxu0 0
  %1251 = vmatpush1.bf16.msra.mxu0 %v1200
  %1252 = vmatprep.subr.bf16.mxu0 0
  %1253 = vmatpush1.bf16.msra.mxu0 %v1201
  %1254 = vmatprep.subr.bf16.mxu0 0
  %1255 = vmatpush1.bf16.msra.mxu0 %v1202
  %1256 = vmatprep.subr.bf16.mxu0 0
  %1257 = vmatpush1.bf16.msra.mxu0 %v1203
  %1258 = vmatprep.subr.bf16.mxu0 0
  %1259 = vmatpush1.bf16.msra.mxu0 %v1204
  %1260 = vmatprep.subr.bf16.mxu0 0
  %1261 = vmatpush1.bf16.msra.mxu0 %v1205
  %1262 = vmatprep.subr.bf16.mxu0 0
  %1263 = vmatpush1.bf16.msra.mxu0 %v1206
  %1264 = vmatprep.subr.bf16.mxu0 0
  %1265 = vmatpush1.bf16.msra.mxu0 %v1207
  %1266 = vmatprep.subr.bf16.mxu0 0
  %1267 = vmatpush1.bf16.msra.mxu0 %v1208
  %1268 = vmatprep.subr.bf16.mxu0 0
  %1269 = vmatpush1.bf16.msra.mxu0 %v1209
  %1270 = vmatprep.subr.bf16.mxu0 0
  %1271 = vmatpush1.bf16.msra.mxu0 %v1210
  %1272 = vmatprep.subr.bf16.mxu0 0
  %1273 = vmatpush1.bf16.msra.mxu0 %v1211
  %1274 = vmatprep.subr.bf16.mxu0 0
  %1275 = vmatpush1.bf16.msra.mxu0 %v1212
  %1276 = vmatprep.subr.bf16.mxu0 0
  %1277 = vmatpush1.bf16.msra.mxu0 %v1213
  %1278 = vmatprep.mubr.bf16.mxu0 %v1041
  %1279 = vmatmul.mubr.bf16.gmra.mrb[0].mxu0 %v1027
  %v1280 = vpop.f32.mrb[0].mxu0
  %v1281 = vadd.f32 %v1100, %v1280
  %v1282 = vpop.f32.mrb[0].mxu0
  %v1283 = vpop.f32.mrb[0].mxu0
  %v1284 = vadd.f32 %v1100, %v1283
  %v1285 = vpop.f32.mrb[0].mxu0
  %1286 = vmatprep.mubr.bf16.mxu0 %v1042
  %1287 = vmatmul.mubr.bf16.gmra.mrb[0].mxu0 %v1028
  %v1288 = vpop.f32.mrb[0].mxu0
  %v1289 = vadd.f32 %v1100, %v1288
  %v1290 = vpop.f32.mrb[0].mxu0
  %v1291 = vpop.f32.mrb[0].mxu0
  %v1292 = vadd.f32 %v1100, %v1291
  %v1293 = vpop.f32.mrb[0].mxu0
  %1294 = vdwg.mxu0
  %1295 = vmatprep.subr.bf16.mxu0 0
  %1296 = vmatpush1.bf16.msra.mxu0 %v1214
  %1297 = vmatprep.subr.bf16.mxu0 0
  %1298 = vmatpush1.bf16.msra.mxu0 %v1215
  %1299 = vmatprep.subr.bf16.mxu0 0
  %1300 = vmatpush1.bf16.msra.mxu0 %v1216
  %1301 = vmatprep.subr.bf16.mxu0 0
  %1302 = vmatpush1.bf16.msra.mxu0 %v1217
  %1303 = vmatprep.subr.bf16.mxu0 0
  %1304 = vmatpush1.bf16.msra.mxu0 %v1218
  %1305 = vmatprep.subr.bf16.mxu0 0
  %1306 = vmatpush1.bf16.msra.mxu0 %v1219
  %1307 = vmatprep.subr.bf16.mxu0 0
  %1308 = vmatpush1.bf16.msra.mxu0 %v1220
  %1309 = vmatprep.subr.bf16.mxu0 0
  %1310 = vmatpush1.bf16.msra.mxu0 %v1221
  %1311 = vmatprep.subr.bf16.mxu0 0
  %1312 = vmatpush1.bf16.msra.mxu0 0
  %1313 = vmatprep.subr.bf16.mxu0 0
  %1314 = vmatpush1.bf16.msra.mxu0 0
  %1315 = vmatprep.subr.bf16.mxu0 0
  %1316 = vmatpush1.bf16.msra.mxu0 0
  %1317 = vmatprep.subr.bf16.mxu0 0
  %1318 = vmatpush1.bf16.msra.mxu0 0
  %1319 = vmatprep.subr.bf16.mxu0 0
  %1320 = vmatpush1.bf16.msra.mxu0 0
  %1321 = vmatprep.subr.bf16.mxu0 0
  %1322 = vmatpush1.bf16.msra.mxu0 0
  %1323 = vmatprep.subr.bf16.mxu0 0
  %1324 = vmatpush1.bf16.msra.mxu0 0
  %1325 = vmatprep.subr.bf16.mxu0 0
  %1326 = vmatpush1.bf16.msra.mxu0 0
  %1327 = vmatprep.mubr.bf16.mxu0 0
  %1328 = vmatmul.mubr.bf16.gmra.mrb[0].mxu0 %v1043
  %v1329 = vpop.f32.mrb[0].mxu0
  %v1330 = vadd.f32 %v1281, %v1329
  %v1331 = vpop.f32.mrb[0].mxu0
  %v1332 = vpop.f32.mrb[0].mxu0
  %v1333 = vadd.f32 %v1284, %v1332
  %v1334 = vpop.f32.mrb[0].mxu0
  %1335 = vmatprep.mubr.bf16.mxu0 0
  %1336 = vmatmul.mubr.bf16.gmra.mrb[0].mxu0 %v1044
  %v1337 = vpop.f32.mrb[0].mxu0
  %v1338 = vadd.f32 %v1289, %v1337
  %v1339 = vpop.f32.mrb[0].mxu0
  %v1340 = vpop.f32.mrb[0].mxu0
  %v1341 = vadd.f32 %v1292, %v1340
  %v1342 = vpop.f32.mrb[0].mxu0
  %1343 = vdwg.mxu0
  %v1344 = vmax.f32 %v1330, 0.0
  %v1345 = vmax.f32 %v1333, 0.0
  %v1346 = vmax.f32 %v1338, 0.0
  %v1347 = vmax.f32 %v1341, 0.0
  %v1348 = vadd.f32 %v1344, %v1011
  %v1349 = vadd.f32 %v1345, %v1012
  %v1350 = vadd.f32 %v1346, %v1013
  %v1351 = vadd.f32 %v1347, %v1014
  %s1352 = scalar_lea.vmem %s7, 1
  %v1353 = vld [vmem:[%s1352] sm:$0x1]
  %s1354 = scalar_lea.vmem %s8, 1
  %v1355 = vld [vmem:[%s1354] sm:$0x1]
  %1356 = vadd.xlane.f32.xlu0 %v1348
  %v1357 = vpop.xlane.xlu0 %1356
  %1358 = vadd.xlane.f32.xlu0 %v1349
  %v1359 = vpop.xlane.xlu0 %1358
  %1360 = vadd.xlane.f32.xlu0 %v1350
  %v1361 = vpop.xlane.xlu0 %1360
  %1362 = vadd.xlane.f32.xlu0 %v1351
  %v1363 = vpop.xlane.xlu0 %1362
  %v1364 = vmul.f32 %v1357, 0.03125
  %v1365 = vmul.f32 %v1359, 0.03125
  %v1366 = vmul.f32 %v1361, 0.03125
  %v1367 = vmul.f32 %v1363, 0.03125
  %v1368 = vmul.f32 %v1348, %v1348
  %v1369 = vmul.f32 %v1349, %v1349
  %v1370 = vmul.f32 %v1350, %v1350
  %v1371 = vmul.f32 %v1351, %v1351
  %1372 = vadd.xlane.f32.xlu0 %v1368
  %v1373 = vpop.xlane.xlu0 %1372
  %1374 = vadd.xlane.f32.xlu0 %v1369
  %v1375 = vpop.xlane.xlu0 %1374
  %1376 = vadd.xlane.f32.xlu0 %v1370
  %v1377 = vpop.xlane.xlu0 %1376
  %1378 = vadd.xlane.f32.xlu0 %v1371
  %v1379 = vpop.xlane.xlu0 %1378
  %v1380 = vmul.f32 %v1373, 0.03125
  %v1381 = vmul.f32 %v1375, 0.03125
  %v1382 = vmul.f32 %v1377, 0.03125
  %v1383 = vmul.f32 %v1379, 0.03125
  %v1384 = vmul.f32 %v1364, %v1364
  %v1385 = vmul.f32 %v1365, %v1365
  %v1386 = vmul.f32 %v1366, %v1366
  %v1387 = vmul.f32 %v1367, %v1367
  %v1388 = vsub.f32 %v1380, %v1384
  %v1389 = vsub.f32 %v1381, %v1385
  %v1390 = vsub.f32 %v1382, %v1386
  %v1391 = vsub.f32 %v1383, %v1387
  %v1392 = vsub.f32 %v1348, %v1364
  %v1393 = vsub.f32 %v1349, %v1365
  %v1394 = vsub.f32 %v1350, %v1366
  %v1395 = vsub.f32 %v1351, %v1367
  %v1396 = vadd.f32 %v1388, 1e-05
  %v1397 = vadd.f32 %v1389, 1e-05
  %v1398 = vadd.f32 %v1390, 1e-05
  %v1399 = vadd.f32 %v1391, 1e-05
  %v1400 = vrsqrt.pop %v1396
  %v1401 = vrsqrt.pop %v1397
  %v1402 = vrsqrt.pop %v1398
  %v1403 = vrsqrt.pop %v1399
  %v1404 = vmul.f32 %v1392, %v1400
  %v1405 = vmul.f32 %v1393, %v1401
  %v1406 = vmul.f32 %v1394, %v1402
  %v1407 = vmul.f32 %v1395, %v1403
  %v1409 = vlaneseq
  %v1410 = vshrl.u32 %v1409, 7
  %v1411 = vsub.s32 0, %v1410
  %v1412 = vrot.slane %v1353, %v1411
  %v1414 = vmul.f32 %v1404, %v1412
  %v1415 = vmul.f32 %v1405, %v1412
  %v1416 = vmul.f32 %v1406, %v1412
  %v1417 = vmul.f32 %v1407, %v1412
  %v1419 = vlaneseq
  %v1420 = vshrl.u32 %v1419, 7
  %v1421 = vsub.s32 0, %v1420
  %v1422 = vrot.slane %v1355, %v1421
  %v1424 = vadd.f32 %v1414, %v1422
  %v1425 = vadd.f32 %v1415, %v1422
  %v1426 = vadd.f32 %v1416, %v1422
  %v1427 = vadd.f32 %v1417, %v1422
  %v1428 = vpack.c.bf16 %v1425, %v1424
  %v1429 = vpack.c.bf16 %v1427, %v1426
  %s1430 = scalar_lea.vmem %s9, 64
  %v1431 = vld [vmem:[%s1430] sm:$0xf]
  %v1432 = vld [vmem:[%s1430 + $0x4] sm:$0xf]
  %v1433 = vld [vmem:[%s1430 + $0x8] sm:$0xf]
  %v1434 = vld [vmem:[%s1430 + $0xc] sm:$0xf]
  %v1435 = vld [vmem:[%s1430 + $0x10] sm:$0xf]
  %v1436 = vld [vmem:[%s1430 + $0x14] sm:$0xf]
  %v1437 = vld [vmem:[%s1430 + $0x18] sm:$0xf]
  %v1438 = vld [vmem:[%s1430 + $0x1c] sm:$0xf]
  %v1439 = vld [vmem:[%s1430 + $0x20] sm:$0xf]
  %v1440 = vld [vmem:[%s1430 + $0x24] sm:$0xf]
  %v1441 = vld [vmem:[%s1430 + $0x28] sm:$0xf]
  %v1442 = vld [vmem:[%s1430 + $0x2c] sm:$0xf]
  %v1443 = vld [vmem:[%s1430 + $0x30] sm:$0xf]
  %v1444 = vld [vmem:[%s1430 + $0x34] sm:$0xf]
  %v1445 = vld [vmem:[%s1430 + $0x38] sm:$0xf]
  %v1446 = vld [vmem:[%s1430 + $0x3c] sm:$0xf]
  %s1447 = scalar_lea.vmem %s10, 1
  %v1448 = vld [vmem:[%s1447] sm:$0x1]
  %v1450 = vlaneseq
  %v1451 = vshrl.u32 %v1450, 7
  %v1452 = vsub.s32 0, %v1451
  %v1453 = vrot.slane %v1448, %v1452
  %v1471 = vunpack.c.l.b16 %v1431
  %v1472 = vunpack.c.l.b16 %v1432
  %v1473 = vunpack.c.l.b16 %v1433
  %v1474 = vunpack.c.l.b16 %v1434
  %v1475 = vunpack.c.l.b16 %v1435
  %v1476 = vunpack.c.l.b16 %v1436
  %v1477 = vunpack.c.l.b16 %v1437
  %v1478 = vunpack.c.l.b16 %v1438
  %v1479 = vunpack.c.l.b16 %v1439
  %v1480 = vunpack.c.l.b16 %v1440
  %v1481 = vunpack.c.l.b16 %v1441
  %v1482 = vunpack.c.l.b16 %v1442
  %v1483 = vunpack.c.l.b16 %v1443
  %v1484 = vunpack.c.l.b16 %v1444
  %v1485 = vunpack.c.l.b16 %v1445
  %v1486 = vunpack.c.l.b16 %v1446
  %v1487 = vpack.c.b16 %v1472, %v1471
  %v1488 = vpack.c.b16 %v1474, %v1473
  %v1489 = vpack.c.b16 %v1476, %v1475
  %v1490 = vpack.c.b16 %v1478, %v1477
  %v1491 = vpack.c.b16 %v1480, %v1479
  %v1492 = vpack.c.b16 %v1482, %v1481
  %v1493 = vpack.c.b16 %v1484, %v1483
  %v1494 = vpack.c.b16 %v1486, %v1485
  %1503 = vmatprep.subr.bf16.mxu0 0
  %1504 = vmatpush1.bf16.msra.mxu0 %v1487
  %1505 = vmatprep.subr.bf16.mxu0 0
  %1506 = vmatpush1.bf16.msra.mxu0 %v1488
  %1507 = vmatprep.subr.bf16.mxu0 0
  %1508 = vmatpush1.bf16.msra.mxu0 %v1489
  %1509 = vmatprep.subr.bf16.mxu0 0
  %1510 = vmatpush1.bf16.msra.mxu0 %v1490
  %1511 = vmatprep.subr.bf16.mxu0 0
  %1512 = vmatpush1.bf16.msra.mxu0 %v1491
  %1513 = vmatprep.subr.bf16.mxu0 0
  %1514 = vmatpush1.bf16.msra.mxu0 %v1492
  %1515 = vmatprep.subr.bf16.mxu0 0
  %1516 = vmatpush1.bf16.msra.mxu0 %v1493
  %1517 = vmatprep.subr.bf16.mxu0 0
  %1518 = vmatpush1.bf16.msra.mxu0 %v1494
  %1519 = vmatprep.subr.bf16.mxu0 0
  %1520 = vmatpush1.bf16.msra.mxu0 0
  %1521 = vmatprep.subr.bf16.mxu0 0
  %1522 = vmatpush1.bf16.msra.mxu0 0
  %1523 = vmatprep.subr.bf16.mxu0 0
  %1524 = vmatpush1.bf16.msra.mxu0 0
  %1525 = vmatprep.subr.bf16.mxu0 0
  %1526 = vmatpush1.bf16.msra.mxu0 0
  %1527 = vmatprep.subr.bf16.mxu0 0
  %1528 = vmatpush1.bf16.msra.mxu0 0
  %1529 = vmatprep.subr.bf16.mxu0 0
  %1530 = vmatpush1.bf16.msra.mxu0 0
  %1531 = vmatprep.subr.bf16.mxu0 0
  %1532 = vmatpush1.bf16.msra.mxu0 0
  %1533 = vmatprep.subr.bf16.mxu0 0
  %1534 = vmatpush1.bf16.msra.mxu0 0
  %1535 = vmatprep.mubr.bf16.mxu0 0
  %1536 = vmatmul.mubr.bf16.gmra.mrb[0].mxu0 %v1428
  %v1537 = vpop.f32.mrb[0].mxu0
  %v1538 = vadd.f32 %v1453, %v1537
  %v1539 = vpop.f32.mrb[0].mxu0
  %v1540 = vpop.f32.mrb[0].mxu0
  %v1541 = vadd.f32 %v1453, %v1540
  %v1542 = vpop.f32.mrb[0].mxu0
  %1543 = vmatprep.mubr.bf16.mxu0 0
  %1544 = vmatmul.mubr.bf16.gmra.mrb[0].mxu0 %v1429
  %v1545 = vpop.f32.mrb[0].mxu0
  %v1546 = vadd.f32 %v1453, %v1545
  %v1547 = vpop.f32.mrb[0].mxu0
  %v1548 = vpop.f32.mrb[0].mxu0
  %v1549 = vadd.f32 %v1453, %v1548
  %v1550 = vpop.f32.mrb[0].mxu0
  %1551 = vdwg.mxu0
  %v1552 = vmax.f32 %v1538, 0.0
  %v1553 = vmax.f32 %v1541, 0.0
  %v1554 = vmax.f32 %v1546, 0.0
  %v1555 = vmax.f32 %v1549, 0.0
  %v1556 = vpack.c.bf16 %v1553, %v1552
  %v1557 = vpack.c.bf16 %v1555, %v1554
  %s1558 = scalar_lea.vmem %s11, 64
  %v1559 = vld [vmem:[%s1558] sm:$0xf]
  %v1560 = vld [vmem:[%s1558 + $0x4] sm:$0xf]
  %v1561 = vld [vmem:[%s1558 + $0x8] sm:$0xf]
  %v1562 = vld [vmem:[%s1558 + $0xc] sm:$0xf]
  %v1563 = vld [vmem:[%s1558 + $0x10] sm:$0xf]
  %v1564 = vld [vmem:[%s1558 + $0x14] sm:$0xf]
  %v1565 = vld [vmem:[%s1558 + $0x18] sm:$0xf]
  %v1566 = vld [vmem:[%s1558 + $0x1c] sm:$0xf]
  %v1567 = vld [vmem:[%s1558 + $0x20] sm:$0xf]
  %v1568 = vld [vmem:[%s1558 + $0x24] sm:$0xf]
  %v1569 = vld [vmem:[%s1558 + $0x28] sm:$0xf]
  %v1570 = vld [vmem:[%s1558 + $0x2c] sm:$0xf]
  %v1571 = vld [vmem:[%s1558 + $0x30] sm:$0xf]
  %v1572 = vld [vmem:[%s1558 + $0x34] sm:$0xf]
  %v1573 = vld [vmem:[%s1558 + $0x38] sm:$0xf]
  %v1574 = vld [vmem:[%s1558 + $0x3c] sm:$0xf]
  %s1575 = scalar_lea.vmem %s12, 1
  %v1576 = vld [vmem:[%s1575] sm:$0x1]
  %v1578 = vlaneseq
  %v1579 = vshrl.u32 %v1578, 7
  %v1580 = vsub.s32 0, %v1579
  %v1581 = vrot.slane %v1576, %v1580
  %v1599 = vunpack.c.l.b16 %v1559
  %v1600 = vunpack.c.l.b16 %v1560
  %v1601 = vunpack.c.l.b16 %v1561
  %v1602 = vunpack.c.l.b16 %v1562
  %v1603 = vunpack.c.l.b16 %v1563
  %v1604 = vunpack.c.l.b16 %v1564
  %v1605 = vunpack.c.l.b16 %v1565
  %v1606 = vunpack.c.l.b16 %v1566
  %v1607 = vunpack.c.l.b16 %v1567
  %v1608 = vunpack.c.l.b16 %v1568
  %v1609 = vunpack.c.l.b16 %v1569
  %v1610 = vunpack.c.l.b16 %v1570
  %v1611 = vunpack.c.l.b16 %v1571
  %v1612 = vunpack.c.l.b16 %v1572
  %v1613 = vunpack.c.l.b16 %v1573
  %v1614 = vunpack.c.l.b16 %v1574
  %v1615 = vpack.c.b16 %v1600, %v1599
  %v1616 = vpack.c.b16 %v1602, %v1601
  %v1617 = vpack.c.b16 %v1604, %v1603
  %v1618 = vpack.c.b16 %v1606, %v1605
  %v1619 = vpack.c.b16 %v1608, %v1607
  %v1620 = vpack.c.b16 %v1610, %v1609
  %v1621 = vpack.c.b16 %v1612, %v1611
  %v1622 = vpack.c.b16 %v1614, %v1613
  %1631 = vmatprep.subr.bf16.mxu0 0
  %1632 = vmatpush1.bf16.msra.mxu0 %v1615
  %1633 = vmatprep.subr.bf16.mxu0 0
  %1634 = vmatpush1.bf16.msra.mxu0 %v1616
  %1635 = vmatprep.subr.bf16.mxu0 0
  %1636 = vmatpush1.bf16.msra.mxu0 %v1617
  %1637 = vmatprep.subr.bf16.mxu0 0
  %1638 = vmatpush1.bf16.msra.mxu0 %v1618
  %1639 = vmatprep.subr.bf16.mxu0 0
  %1640 = vmatpush1.bf16.msra.mxu0 %v1619
  %1641 = vmatprep.subr.bf16.mxu0 0
  %1642 = vmatpush1.bf16.msra.mxu0 %v1620
  %1643 = vmatprep.subr.bf16.mxu0 0
  %1644 = vmatpush1.bf16.msra.mxu0 %v1621
  %1645 = vmatprep.subr.bf16.mxu0 0
  %1646 = vmatpush1.bf16.msra.mxu0 %v1622
  %1647 = vmatprep.subr.bf16.mxu0 0
  %1648 = vmatpush1.bf16.msra.mxu0 0
  %1649 = vmatprep.subr.bf16.mxu0 0
  %1650 = vmatpush1.bf16.msra.mxu0 0
  %1651 = vmatprep.subr.bf16.mxu0 0
  %1652 = vmatpush1.bf16.msra.mxu0 0
  %1653 = vmatprep.subr.bf16.mxu0 0
  %1654 = vmatpush1.bf16.msra.mxu0 0
  %1655 = vmatprep.subr.bf16.mxu0 0
  %1656 = vmatpush1.bf16.msra.mxu0 0
  %1657 = vmatprep.subr.bf16.mxu0 0
  %1658 = vmatpush1.bf16.msra.mxu0 0
  %1659 = vmatprep.subr.bf16.mxu0 0
  %1660 = vmatpush1.bf16.msra.mxu0 0
  %1661 = vmatprep.subr.bf16.mxu0 0
  %1662 = vmatpush1.bf16.msra.mxu0 0
  %1663 = vmatprep.mubr.bf16.mxu0 0
  %1664 = vmatmul.mubr.bf16.gmra.mrb[0].mxu0 %v1556
  %v1665 = vpop.f32.mrb[0].mxu0
  %v1666 = vadd.f32 %v1581, %v1665
  %v1667 = vpop.f32.mrb[0].mxu0
  %v1668 = vpop.f32.mrb[0].mxu0
  %v1669 = vadd.f32 %v1581, %v1668
  %v1670 = vpop.f32.mrb[0].mxu0
  %1671 = vmatprep.mubr.bf16.mxu0 0
  %1672 = vmatmul.mubr.bf16.gmra.mrb[0].mxu0 %v1557
  %v1673 = vpop.f32.mrb[0].mxu0
  %v1674 = vadd.f32 %v1581, %v1673
  %v1675 = vpop.f32.mrb[0].mxu0
  %v1676 = vpop.f32.mrb[0].mxu0
  %v1677 = vadd.f32 %v1581, %v1676
  %v1678 = vpop.f32.mrb[0].mxu0
  %1679 = vdwg.mxu0
  %v1680 = vadd.f32 %v1666, %v1424
  %v1681 = vadd.f32 %v1669, %v1425
  %v1682 = vadd.f32 %v1674, %v1426
  %v1683 = vadd.f32 %v1677, %v1427
  %s1684 = scalar_lea.vmem %s13, 1
  %v1685 = vld [vmem:[%s1684] sm:$0x1]
  %s1686 = scalar_lea.vmem %s14, 1
  %v1687 = vld [vmem:[%s1686] sm:$0x1]
  %1688 = vadd.xlane.f32.xlu0 %v1680
  %v1689 = vpop.xlane.xlu0 %1688
  %1690 = vadd.xlane.f32.xlu0 %v1681
  %v1691 = vpop.xlane.xlu0 %1690
  %1692 = vadd.xlane.f32.xlu0 %v1682
  %v1693 = vpop.xlane.xlu0 %1692
  %1694 = vadd.xlane.f32.xlu0 %v1683
  %v1695 = vpop.xlane.xlu0 %1694
  %v1696 = vmul.f32 %v1689, 0.03125
  %v1697 = vmul.f32 %v1691, 0.03125
  %v1698 = vmul.f32 %v1693, 0.03125
  %v1699 = vmul.f32 %v1695, 0.03125
  %v1700 = vmul.f32 %v1680, %v1680
  %v1701 = vmul.f32 %v1681, %v1681
  %v1702 = vmul.f32 %v1682, %v1682
  %v1703 = vmul.f32 %v1683, %v1683
  %1704 = vadd.xlane.f32.xlu0 %v1700
  %v1705 = vpop.xlane.xlu0 %1704
  %1706 = vadd.xlane.f32.xlu0 %v1701
  %v1707 = vpop.xlane.xlu0 %1706
  %1708 = vadd.xlane.f32.xlu0 %v1702
  %v1709 = vpop.xlane.xlu0 %1708
  %1710 = vadd.xlane.f32.xlu0 %v1703
  %v1711 = vpop.xlane.xlu0 %1710
  %v1712 = vmul.f32 %v1705, 0.03125
  %v1713 = vmul.f32 %v1707, 0.03125
  %v1714 = vmul.f32 %v1709, 0.03125
  %v1715 = vmul.f32 %v1711, 0.03125
  %v1716 = vmul.f32 %v1696, %v1696
  %v1717 = vmul.f32 %v1697, %v1697
  %v1718 = vmul.f32 %v1698, %v1698
  %v1719 = vmul.f32 %v1699, %v1699
  %v1720 = vsub.f32 %v1712, %v1716
  %v1721 = vsub.f32 %v1713, %v1717
  %v1722 = vsub.f32 %v1714, %v1718
  %v1723 = vsub.f32 %v1715, %v1719
  %v1724 = vsub.f32 %v1680, %v1696
  %v1725 = vsub.f32 %v1681, %v1697
  %v1726 = vsub.f32 %v1682, %v1698
  %v1727 = vsub.f32 %v1683, %v1699
  %v1728 = vadd.f32 %v1720, 1e-05
  %v1729 = vadd.f32 %v1721, 1e-05
  %v1730 = vadd.f32 %v1722, 1e-05
  %v1731 = vadd.f32 %v1723, 1e-05
  %v1732 = vrsqrt.pop %v1728
  %v1733 = vrsqrt.pop %v1729
  %v1734 = vrsqrt.pop %v1730
  %v1735 = vrsqrt.pop %v1731
  %v1736 = vmul.f32 %v1724, %v1732
  %v1737 = vmul.f32 %v1725, %v1733
  %v1738 = vmul.f32 %v1726, %v1734
  %v1739 = vmul.f32 %v1727, %v1735
  %v1741 = vlaneseq
  %v1742 = vshrl.u32 %v1741, 7
  %v1743 = vsub.s32 0, %v1742
  %v1744 = vrot.slane %v1685, %v1743
  %v1746 = vmul.f32 %v1736, %v1744
  %v1747 = vmul.f32 %v1737, %v1744
  %v1748 = vmul.f32 %v1738, %v1744
  %v1749 = vmul.f32 %v1739, %v1744
  %v1751 = vlaneseq
  %v1752 = vshrl.u32 %v1751, 7
  %v1753 = vsub.s32 0, %v1752
  %v1754 = vrot.slane %v1687, %v1753
  %v1756 = vadd.f32 %v1746, %v1754
  %v1757 = vadd.f32 %v1747, %v1754
  %v1758 = vadd.f32 %v1748, %v1754
  %v1759 = vadd.f32 %v1749, %v1754
  %v1760 = vpack.c.bf16 %v1757, %v1756
  %v1761 = vpack.c.bf16 %v1759, %v1758
  %v1762 = vld [vmem:[%s15] sm:$0xf]
  %v1763 = vld [vmem:[%s15 + $0x4] sm:$0xf]
  %v1764 = vld [vmem:[%s15 + $0x8] sm:$0xf]
  %v1765 = vld [vmem:[%s15 + $0xc] sm:$0xf]
  %v1766 = vld [vmem:[%s15 + $0x10] sm:$0xf]
  %v1767 = vld [vmem:[%s15 + $0x14] sm:$0xf]
  %v1768 = vld [vmem:[%s15 + $0x18] sm:$0xf]
  %v1769 = vld [vmem:[%s15 + $0x1c] sm:$0xf]
  %v1770 = vld [vmem:[%s15 + $0x20] sm:$0xf]
  %v1771 = vld [vmem:[%s15 + $0x24] sm:$0xf]
  %v1772 = vld [vmem:[%s15 + $0x28] sm:$0xf]
  %v1773 = vld [vmem:[%s15 + $0x2c] sm:$0xf]
  %v1774 = vld [vmem:[%s15 + $0x30] sm:$0xf]
  %v1775 = vld [vmem:[%s15 + $0x34] sm:$0xf]
  %v1776 = vld [vmem:[%s15 + $0x38] sm:$0xf]
  %v1777 = vld [vmem:[%s15 + $0x3c] sm:$0xf]
  %v1778 = vld [vmem:[%s16] sm:$0x1]
  %v1780 = vlaneseq
  %v1781 = vshrl.u32 %v1780, 7
  %v1782 = vsub.s32 0, %v1781
  %v1783 = vrot.slane %v1778, %v1782
  %v1801 = vunpack.c.l.b16 %v1762
  %v1802 = vunpack.c.l.b16 %v1763
  %v1803 = vunpack.c.l.b16 %v1764
  %v1804 = vunpack.c.l.b16 %v1765
  %v1805 = vunpack.c.l.b16 %v1766
  %v1806 = vunpack.c.l.b16 %v1767
  %v1807 = vunpack.c.l.b16 %v1768
  %v1808 = vunpack.c.l.b16 %v1769
  %v1809 = vunpack.c.l.b16 %v1770
  %v1810 = vunpack.c.l.b16 %v1771
  %v1811 = vunpack.c.l.b16 %v1772
  %v1812 = vunpack.c.l.b16 %v1773
  %v1813 = vunpack.c.l.b16 %v1774
  %v1814 = vunpack.c.l.b16 %v1775
  %v1815 = vunpack.c.l.b16 %v1776
  %v1816 = vunpack.c.l.b16 %v1777
  %v1817 = vpack.c.b16 %v1802, %v1801
  %v1818 = vpack.c.b16 %v1804, %v1803
  %v1819 = vpack.c.b16 %v1806, %v1805
  %v1820 = vpack.c.b16 %v1808, %v1807
  %v1821 = vpack.c.b16 %v1810, %v1809
  %v1822 = vpack.c.b16 %v1812, %v1811
  %v1823 = vpack.c.b16 %v1814, %v1813
  %v1824 = vpack.c.b16 %v1816, %v1815
  %1833 = vmatprep.subr.bf16.mxu0 0
  %1834 = vmatpush1.bf16.msra.mxu0 %v1817
  %1835 = vmatprep.subr.bf16.mxu0 0
  %1836 = vmatpush1.bf16.msra.mxu0 %v1818
  %1837 = vmatprep.subr.bf16.mxu0 0
  %1838 = vmatpush1.bf16.msra.mxu0 %v1819
  %1839 = vmatprep.subr.bf16.mxu0 0
  %1840 = vmatpush1.bf16.msra.mxu0 %v1820
  %1841 = vmatprep.subr.bf16.mxu0 0
  %1842 = vmatpush1.bf16.msra.mxu0 %v1821
  %1843 = vmatprep.subr.bf16.mxu0 0
  %1844 = vmatpush1.bf16.msra.mxu0 %v1822
  %1845 = vmatprep.subr.bf16.mxu0 0
  %1846 = vmatpush1.bf16.msra.mxu0 %v1823
  %1847 = vmatprep.subr.bf16.mxu0 0
  %1848 = vmatpush1.bf16.msra.mxu0 %v1824
  %1849 = vmatprep.subr.bf16.mxu0 0
  %1850 = vmatpush1.bf16.msra.mxu0 0
  %1851 = vmatprep.subr.bf16.mxu0 0
  %1852 = vmatpush1.bf16.msra.mxu0 0
  %1853 = vmatprep.subr.bf16.mxu0 0
  %1854 = vmatpush1.bf16.msra.mxu0 0
  %1855 = vmatprep.subr.bf16.mxu0 0
  %1856 = vmatpush1.bf16.msra.mxu0 0
  %1857 = vmatprep.subr.bf16.mxu0 0
  %1858 = vmatpush1.bf16.msra.mxu0 0
  %1859 = vmatprep.subr.bf16.mxu0 0
  %1860 = vmatpush1.bf16.msra.mxu0 0
  %1861 = vmatprep.subr.bf16.mxu0 0
  %1862 = vmatpush1.bf16.msra.mxu0 0
  %1863 = vmatprep.subr.bf16.mxu0 0
  %1864 = vmatpush1.bf16.msra.mxu0 0
  %1865 = vmatprep.mubr.bf16.mxu0 0
  %1866 = vmatmul.mubr.bf16.gmra.mrb[0].mxu0 %v1760
  %v1867 = vpop.f32.mrb[0].mxu0
  %v1868 = vadd.f32 %v1783, %v1867
  %v1869 = vpop.f32.mrb[0].mxu0
  %v1870 = vpop.f32.mrb[0].mxu0
  %v1871 = vadd.f32 %v1783, %v1870
  %v1872 = vpop.f32.mrb[0].mxu0
  %1873 = vmatprep.mubr.bf16.mxu0 0
  %1874 = vmatmul.mubr.bf16.gmra.mrb[0].mxu0 %v1761
  %v1875 = vpop.f32.mrb[0].mxu0
  %v1876 = vadd.f32 %v1783, %v1875
  %v1877 = vpop.f32.mrb[0].mxu0
  %v1878 = vpop.f32.mrb[0].mxu0
  %v1879 = vadd.f32 %v1783, %v1878
  %v1880 = vpop.f32.mrb[0].mxu0
  %1881 = vdwg.mxu0
  %v1882 = vpack.c.bf16 %v1871, %v1868
  %v1883 = vpack.c.bf16 %v1879, %v1876
  %v1886 = vunpack.c.l.b16 %v1882
  %v1887 = vunpack.c.h.b16 %v1882
  %v1888 = vunpack.c.l.b16 %v1883
  %v1889 = vunpack.c.h.b16 %v1883
  %v1890 = vpack.c.b16 %v1886, %v1886
  %v1891 = vpack.c.b16 %v1887, %v1887
  %v1892 = vpack.c.b16 %v1888, %v1888
  %v1893 = vpack.c.b16 %v1889, %v1889
  %1898 = vst [vmem:[%s17] sm:$0xf] %v1890
  %1899 = vst [vmem:[%s17 + $0x4] sm:$0xf] %v1891
  %1900 = vst [vmem:[%s17 + $0x8] sm:$0xf] %v1892
  %1901 = vst [vmem:[%s17 + $0xc] sm:$0xf] %v1893
  // Predicated region
  $region70: #{_lambda_.1} parent=0 // pred_check
    _
  $region71: #{_lambda_.1} parent=0 // pred_check_branch
    %1903 = sbr.rel (0) target = $region73
  $region72: #{_lambda_.1} parent=0 // pred_region
    _
  $region73: #{_lambda_.1} parent=0 // pred_fallthru
    _
  // Predicated region
  $region74: #{_lambda_.1} parent=0 // pred_check
    _
  $region75: #{_lambda_.1} parent=0 // pred_check_branch
    %1905 = sbr.rel (0) target = $region77
  $region76: #{_lambda_.1} parent=0 // pred_region
    _
  $region77: #{_lambda_.1} parent=0 // pred_fallthru
    _

</llo_original>
